<compile_context>
chip_gen: v7x
topology: tpu7x:2x2x1
jax: 0.10.0
libtpu: 0.0.40
codegen_flags: <defaults>
</compile_context>

<pallas_src>
from functools import partial

import jax
import jax.numpy as jnp
from jax.experimental import pallas as pl
from jax.experimental.pallas import tpu as pltpu


_LANE = 128


def _round_up(x, m):
    return ((x + m - 1) // m) * m


def _pick_vmem_limit():
    """<= half of physical VMEM: 32 MiB on v7x (64 MiB/TC), 64 MiB on v5e/v6e."""
    try:
        cap = int(pltpu.get_tpu_info().vmem_capacity_bytes)
        return max(16 * 1024 * 1024, min(64 * 1024 * 1024, cap // 2))
    except Exception:
        return 32 * 1024 * 1024


_VMEM_LIMIT = _pick_vmem_limit()


def _angle_resnet_kernel(s_ref, si_ref,
                         w_in_ref, w_init_ref, b_in_ref,
                         w11_ref, b11_ref, w12_ref, b12_ref,
                         w21_ref, b21_ref, w22_ref, b22_ref,
                         w_out_ref, b_out_ref,
                         out_ref):
    f32 = jnp.float32
    cdt = w_in_ref.dtype  # MXU compute dtype (bf16 production, f32 check path)

    # a = linear_in(relu(s)) + linear_initial(relu(s_initial)).
    # Activations arrive already in the compute dtype; relu(cast(x)) == cast(relu(x)).
    a = jnp.dot(jnp.maximum(s_ref[...], 0), w_in_ref[...], preferred_element_type=f32)
    a = a + jnp.dot(jnp.maximum(si_ref[...], 0), w_init_ref[...],
                    preferred_element_type=f32)
    a = a + b_in_ref[...]          # pre-summed bias (b_in + b_init), f32

    # Two ResNet layers: a = a + linear_2(relu(linear_1(relu(a)))).
    # maximum + astype fused directly into the dot operand (no f32 round trip).
    for w1, b1, w2, b2 in ((w11_ref, b11_ref, w12_ref, b12_ref),
                           (w21_ref, b21_ref, w22_ref, b22_ref)):
        h = jnp.dot(jnp.maximum(a, 0.0).astype(cdt), w1[...],
                    preferred_element_type=f32) + b1[...]
        h = jnp.dot(jnp.maximum(h, 0.0).astype(cdt), w2[...],
                    preferred_element_type=f32) + b2[...]
        a = a + h

    # alpha = linear_out(relu(a)); lane-dense (padded to 128) store.
    alpha = jnp.dot(jnp.maximum(a, 0.0).astype(cdt), w_out_ref[...],
                    preferred_element_type=f32) + b_out_ref[...]
    out_ref[...] = alpha.astype(out_ref.dtype)


def pack_params(params, compute_dtype=jnp.bfloat16):
    """Pad all matmul output dims to lane width (128), cast weights to the MXU
    compute dtype, pre-sum the two input-projection biases. Biases stay f32."""
    c_s, c = params["w_in"].shape
    n_out = params["w_out"].shape[1]
    c_p = _round_up(c, _LANE)
    n_out_p = _round_up(n_out, _LANE)

    def pad_w(w, rows, cols):
        return jnp.pad(w, ((0, rows - w.shape[0]),
                           (0, cols - w.shape[1]))).astype(compute_dtype)

    def pad_b(b, cols):
        return jnp.pad(b, ((0, 0), (0, cols - b.shape[1]))).astype(jnp.float32)

    return {
        # Input projections keep their natural row count c_s (activations are not
        # feature-padded); only the output lanes are padded to 128.
        "w_in":   pad_w(params["w_in"],   c_s, c_p),
        "w_init": pad_w(params["w_init"], c_s, c_p),
        "b_in":   pad_b(params["b_in"] + params["b_init"], c_p),
        "w11": pad_w(params["w11"], c_p, c_p), "b11": pad_b(params["b11"], c_p),
        "w12": pad_w(params["w12"], c_p, c_p), "b12": pad_b(params["b12"], c_p),
        "w21": pad_w(params["w21"], c_p, c_p), "b21": pad_b(params["b21"], c_p),
        "w22": pad_w(params["w22"], c_p, c_p), "b22": pad_b(params["b22"], c_p),
        "w_out": pad_w(params["w_out"], c_p, n_out_p),
        "b_out": pad_b(params["b_out"], n_out_p),
    }


@partial(jax.jit, static_argnames=("n_torsion_angles", "tm"))
def angle_resnet_forward(s, s_initial, packed, n_torsion_angles=7, tm=1024):
    """s, s_initial: [..., c_s] float32. Returns [..., n_torsion_angles, 2] f32."""
    c_s = s.shape[-1]
    lead = s.shape[:-1]
    n_rows = 1
    for d in lead:
        n_rows *= d

    cdt = packed["w_in"].dtype           # compute/stream dtype (bf16 or f32)
    itemsize = jnp.dtype(cdt).itemsize
    c_p = packed["w11"].shape[1]
    n_out_p = packed["w_out"].shape[1]
    n_out = 2 * n_torsion_angles

    # Stream activations in the MXU dtype (ReLU commutes with the downcast).
    s2d = s.reshape(n_rows, c_s).astype(cdt)
    si2d = s_initial.reshape(n_rows, c_s).astype(cdt)

    # Row tile: large for throughput, but capped at ~half the rows so the
    # "parallel" grid keeps >=2 steps (v7x megacore). Sublane rounding is
    # dtype-aware: 16 for bf16 packing, 8 for f32.
    row_mult = 32 // itemsize
    tm_eff = max(row_mult, min(tm, _round_up(pl.cdiv(n_rows, 2), row_mult)))
    n_rows_p = _round_up(n_rows, tm_eff)
    if n_rows_p != n_rows:
        pad = ((0, n_rows_p - n_rows), (0, 0))
        s2d = jnp.pad(s2d, pad)
        si2d = jnp.pad(si2d, pad)

    row_spec = pl.BlockSpec((tm_eff, c_s), lambda i: (i, 0))
    out_spec = pl.BlockSpec((tm_eff, n_out_p), lambda i: (i, 0))

    weight_args = (
        packed["w_in"], packed["w_init"], packed["b_in"],
        packed["w11"], packed["b11"], packed["w12"], packed["b12"],
        packed["w21"], packed["b21"], packed["w22"], packed["b22"],
        packed["w_out"], packed["b_out"],
    )
    # Constant index_map -> DMA'd once and resident for the whole grid.
    weight_specs = [pl.BlockSpec(w.shape, lambda i: (0, 0)) for w in weight_args]

    flops = 2 * n_rows_p * (2 * c_s * c_p + 4 * c_p * c_p + c_p * n_out_p)
    bytes_accessed = (2 * n_rows_p * c_s * itemsize          # activation streams
                      + n_rows_p * n_out_p * itemsize        # output writeback
                      + sum(int(w.size) * jnp.dtype(w.dtype).itemsize
                            for w in weight_args))

    out = pl.pallas_call(
        _angle_resnet_kernel,
        out_shape=jax.ShapeDtypeStruct((n_rows_p, n_out_p), cdt),
        grid_spec=pltpu.PrefetchScalarGridSpec(
            num_scalar_prefetch=0,
            grid=(n_rows_p // tm_eff,),
            in_specs=[row_spec, row_spec] + weight_specs,
            out_specs=out_spec,
        ),
        compiler_params=pltpu.CompilerParams(
            dimension_semantics=("parallel",),
            vmem_limit_bytes=_VMEM_LIMIT,
        ),
        cost_estimate=pl.CostEstimate(
            flops=flops, transcendentals=0, bytes_accessed=bytes_accessed),
    )(s2d, si2d, *weight_args)

    alpha = out[:n_rows, :n_out].astype(jnp.float32)
    return alpha.reshape(lead + (n_torsion_angles, 2))


def init_params(key, c_s, c, n_torsion_angles=7):
    """Deterministic synthetic params. Weights stored as (in, out) = W.T, f32."""
    n_out = 2 * n_torsion_angles
    keys = jax.random.split(key, 14)

    def w(k, i, o):
        return jax.random.normal(k, (i, o), jnp.float32) * (1.0 / jnp.sqrt(i))

    def b(k, o):
        return jax.random.normal(k, (1, o), jnp.float32) * 0.02

    return {
        "w_in":   w(keys[0], c_s, c), "b_in":   b(keys[1], c),
        "w_init": w(keys[2], c_s, c), "b_init": b(keys[3], c),
        "w11":    w(keys[4], c, c),   "b11":    b(keys[5], c),
        "w12":    w(keys[6], c, c),   "b12":    b(keys[7], c),
        "w21":    w(keys[8], c, c),   "b21":    b(keys[9], c),
        "w22":    w(keys[10], c, c),  "b22":    b(keys[11], c),
        "w_out":  w(keys[12], c, n_out), "b_out": b(keys[13], n_out),
    }


def _reference(s, s_initial, p, n_torsion_angles=7):
    hp = jax.lax.Precision.HIGHEST
    relu = lambda x: jnp.maximum(x, 0.0)
    dot = lambda x, w: jnp.dot(x, w, precision=hp)
    a = (dot(relu(s), p["w_in"]) + p["b_in"][0]
         + dot(relu(s_initial), p["w_init"]) + p["b_init"][0])
    for w1, b1, w2, b2 in ((p["w11"], p["b11"], p["w12"], p["b12"]),
                           (p["w21"], p["b21"], p["w22"], p["b22"])):
        h = dot(relu(a), w1) + b1[0]
        h = dot(relu(h), w2) + b2[0]
        a = a + h
    alpha = dot(relu(a), p["w_out"]) + p["b_out"][0]
    return alpha.reshape(alpha.shape[:-1] + (n_torsion_angles, 2))


if __name__ == "__main__":
    key = jax.random.PRNGKey(0)
    n_tors = 7

    configs = [
        dict(batch=2, seq=8, c_s=32, c=32),     # tiny: single-step grid
        dict(batch=1, seq=300, c_s=64, c=64),   # row padding + 2-step parallel grid
    ]

    for cfg in configs:
        k1, k2, k3, key = jax.random.split(key, 4)
        s = jax.random.normal(k1, (cfg["batch"], cfg["seq"], cfg["c_s"]), jnp.float32)
        s_initial = jax.random.normal(k2, (cfg["batch"], cfg["seq"], cfg["c_s"]),
                                      jnp.float32)
        params = init_params(k3, cfg["c_s"], cfg["c"], n_tors)

        ref = _reference(s, s_initial, params, n_torsion_angles=n_tors)

        # f32 MXU-operand path: tight numerical check of the fused structure.
        packed_f32 = pack_params(params, compute_dtype=jnp.float32)
        a32 = angle_resnet_forward(s, s_initial, packed_f32, n_torsion_angles=n_tors)
        a32 = jax.block_until_ready(a32)
        assert a32.shape == (cfg["batch"], cfg["seq"], n_tors, 2), a32.shape
        assert jnp.allclose(a32, ref, atol=1e-4, rtol=1e-4), "f32 mismatch vs reference"

        # bf16 production path (bf16 weights + activations + output store).
        packed_bf16 = pack_params(params, compute_dtype=jnp.bfloat16)
        a16 = angle_resnet_forward(s, s_initial, packed_bf16, n_torsion_angles=n_tors)
        a16 = jax.block_until_ready(a16)
        assert a16.shape == (cfg["batch"], cfg["seq"], n_tors, 2), a16.shape
        assert jnp.allclose(a16, ref, atol=1e-1, rtol=1e-1), "bf16 mismatch vs reference"

    print("KERNEL_OK")
</pallas_src>

<mosaic_0001>
module attributes {stable_mosaic.version = 11 : i64} {
  func.func @_angle_resnet_kernel(%arg0: i32, %arg1: memref<8x32xf32, #tpu.memory_space<vmem>>, %arg2: memref<8x32xf32, #tpu.memory_space<vmem>>, %arg3: memref<32x128xf32, #tpu.memory_space<vmem>>, %arg4: memref<32x128xf32, #tpu.memory_space<vmem>>, %arg5: memref<1x128xf32, #tpu.memory_space<vmem>>, %arg6: memref<128x128xf32, #tpu.memory_space<vmem>>, %arg7: memref<1x128xf32, #tpu.memory_space<vmem>>, %arg8: memref<128x128xf32, #tpu.memory_space<vmem>>, %arg9: memref<1x128xf32, #tpu.memory_space<vmem>>, %arg10: memref<128x128xf32, #tpu.memory_space<vmem>>, %arg11: memref<1x128xf32, #tpu.memory_space<vmem>>, %arg12: memref<128x128xf32, #tpu.memory_space<vmem>>, %arg13: memref<1x128xf32, #tpu.memory_space<vmem>>, %arg14: memref<128x128xf32, #tpu.memory_space<vmem>>, %arg15: memref<1x128xf32, #tpu.memory_space<vmem>>, %arg16: memref<8x128xf32, #tpu.memory_space<vmem>>) attributes {dimension_semantics = [#tpu.dimension_semantics<parallel>], iteration_bounds = array<i64: 2>, scalar_prefetch = 0 : i64, scratch_operands = 0 : i64, tpu.core_type = #tpu.core_type<tc>, window_params = [{transform_indices = @transform_0, window_bounds = array<i64: 8, 32>}, {transform_indices = @transform_1, window_bounds = array<i64: 8, 32>}, {pipeline_mode = #tpu.pipeline_mode<synchronous>, transform_indices = @transform_2, window_bounds = array<i64: 32, 128>}, {pipeline_mode = #tpu.pipeline_mode<synchronous>, transform_indices = @transform_3, window_bounds = array<i64: 32, 128>}, {pipeline_mode = #tpu.pipeline_mode<synchronous>, transform_indices = @transform_4, window_bounds = array<i64: 1, 128>}, {pipeline_mode = #tpu.pipeline_mode<synchronous>, transform_indices = @transform_5, window_bounds = array<i64: 128, 128>}, {pipeline_mode = #tpu.pipeline_mode<synchronous>, transform_indices = @transform_6, window_bounds = array<i64: 1, 128>}, {pipeline_mode = #tpu.pipeline_mode<synchronous>, transform_indices = @transform_7, window_bounds = array<i64: 128, 128>}, {pipeline_mode = #tpu.pipeline_mode<synchronous>, transform_indices = @transform_8, window_bounds = array<i64: 1, 128>}, {pipeline_mode = #tpu.pipeline_mode<synchronous>, transform_indices = @transform_9, window_bounds = array<i64: 128, 128>}, {pipeline_mode = #tpu.pipeline_mode<synchronous>, transform_indices = @transform_10, window_bounds = array<i64: 1, 128>}, {pipeline_mode = #tpu.pipeline_mode<synchronous>, transform_indices = @transform_11, window_bounds = array<i64: 128, 128>}, {pipeline_mode = #tpu.pipeline_mode<synchronous>, transform_indices = @transform_12, window_bounds = array<i64: 1, 128>}, {pipeline_mode = #tpu.pipeline_mode<synchronous>, transform_indices = @transform_13, window_bounds = array<i64: 128, 128>}, {pipeline_mode = #tpu.pipeline_mode<synchronous>, transform_indices = @transform_14, window_bounds = array<i64: 1, 128>}, {transform_indices = @transform_15, window_bounds = array<i64: 8, 128>}]} {
    %c0 = arith.constant 0 : index
    %c0_0 = arith.constant 0 : index
    %0 = vector.load %arg1[%c0, %c0_0] : memref<8x32xf32, #tpu.memory_space<vmem>>, vector<8x32xf32>
    %cst = arith.constant 0.000000e+00 : f32
    %1 = vector.broadcast %cst : f32 to vector<8x32xf32>
    %2 = arith.maximumf %0, %1 : vector<8x32xf32>
    %c0_1 = arith.constant 0 : index
    %c0_2 = arith.constant 0 : index
    %3 = vector.load %arg3[%c0_1, %c0_2] : memref<32x128xf32, #tpu.memory_space<vmem>>, vector<32x128xf32>
    %cst_3 = arith.constant dense<0.000000e+00> : vector<8x128xf32>
    %4 = tpu.matmul %2, %3, %cst_3 {dimension_numbers = #tpu.dot_dimension_numbers<[1], [0], [0], [1], [0, 0, 1, 1], [], []>} : vector<8x32xf32>, vector<32x128xf32>, vector<8x128xf32> -> vector<8x128xf32>
    %c0_4 = arith.constant 0 : index
    %c0_5 = arith.constant 0 : index
    %5 = vector.load %arg2[%c0_4, %c0_5] : memref<8x32xf32, #tpu.memory_space<vmem>>, vector<8x32xf32>
    %cst_6 = arith.constant 0.000000e+00 : f32
    %6 = vector.broadcast %cst_6 : f32 to vector<8x32xf32>
    %7 = arith.maximumf %5, %6 : vector<8x32xf32>
    %c0_7 = arith.constant 0 : index
    %c0_8 = arith.constant 0 : index
    %8 = vector.load %arg4[%c0_7, %c0_8] : memref<32x128xf32, #tpu.memory_space<vmem>>, vector<32x128xf32>
    %cst_9 = arith.constant dense<0.000000e+00> : vector<8x128xf32>
    %9 = tpu.matmul %7, %8, %cst_9 {dimension_numbers = #tpu.dot_dimension_numbers<[1], [0], [0], [1], [0, 0, 1, 1], [], []>} : vector<8x32xf32>, vector<32x128xf32>, vector<8x128xf32> -> vector<8x128xf32>
    %10 = arith.addf %4, %9 : vector<8x128xf32>
    %c0_10 = arith.constant 0 : index
    %c0_11 = arith.constant 0 : index
    %11 = vector.load %arg5[%c0_10, %c0_11] : memref<1x128xf32, #tpu.memory_space<vmem>>, vector<1x128xf32>
    %12 = vector.broadcast %11 : vector<1x128xf32> to vector<8x128xf32>
    %13 = arith.addf %10, %12 : vector<8x128xf32>
    %cst_12 = arith.constant 0.000000e+00 : f32
    %14 = vector.broadcast %cst_12 : f32 to vector<8x128xf32>
    %15 = arith.maximumf %13, %14 : vector<8x128xf32>
    %c0_13 = arith.constant 0 : index
    %c0_14 = arith.constant 0 : index
    %16 = vector.load %arg6[%c0_13, %c0_14] : memref<128x128xf32, #tpu.memory_space<vmem>>, vector<128x128xf32>
    %cst_15 = arith.constant dense<0.000000e+00> : vector<8x128xf32>
    %17 = tpu.matmul %15, %16, %cst_15 {dimension_numbers = #tpu.dot_dimension_numbers<[1], [0], [0], [1], [0, 0, 1, 1], [], []>} : vector<8x128xf32>, vector<128x128xf32>, vector<8x128xf32> -> vector<8x128xf32>
    %c0_16 = arith.constant 0 : index
    %c0_17 = arith.constant 0 : index
    %18 = vector.load %arg7[%c0_16, %c0_17] : memref<1x128xf32, #tpu.memory_space<vmem>>, vector<1x128xf32>
    %19 = vector.broadcast %18 : vector<1x128xf32> to vector<8x128xf32>
    %20 = arith.addf %17, %19 : vector<8x128xf32>
    %cst_18 = arith.constant 0.000000e+00 : f32
    %21 = vector.broadcast %cst_18 : f32 to vector<8x128xf32>
    %22 = arith.maximumf %20, %21 : vector<8x128xf32>
    %c0_19 = arith.constant 0 : index
    %c0_20 = arith.constant 0 : index
    %23 = vector.load %arg8[%c0_19, %c0_20] : memref<128x128xf32, #tpu.memory_space<vmem>>, vector<128x128xf32>
    %cst_21 = arith.constant dense<0.000000e+00> : vector<8x128xf32>
    %24 = tpu.matmul %22, %23, %cst_21 {dimension_numbers = #tpu.dot_dimension_numbers<[1], [0], [0], [1], [0, 0, 1, 1], [], []>} : vector<8x128xf32>, vector<128x128xf32>, vector<8x128xf32> -> vector<8x128xf32>
    %c0_22 = arith.constant 0 : index
    %c0_23 = arith.constant 0 : index
    %25 = vector.load %arg9[%c0_22, %c0_23] : memref<1x128xf32, #tpu.memory_space<vmem>>, vector<1x128xf32>
    %26 = vector.broadcast %25 : vector<1x128xf32> to vector<8x128xf32>
    %27 = arith.addf %24, %26 : vector<8x128xf32>
    %28 = arith.addf %13, %27 : vector<8x128xf32>
    %cst_24 = arith.constant 0.000000e+00 : f32
    %29 = vector.broadcast %cst_24 : f32 to vector<8x128xf32>
    %30 = arith.maximumf %28, %29 : vector<8x128xf32>
    %c0_25 = arith.constant 0 : index
    %c0_26 = arith.constant 0 : index
    %31 = vector.load %arg10[%c0_25, %c0_26] : memref<128x128xf32, #tpu.memory_space<vmem>>, vector<128x128xf32>
    %cst_27 = arith.constant dense<0.000000e+00> : vector<8x128xf32>
    %32 = tpu.matmul %30, %31, %cst_27 {dimension_numbers = #tpu.dot_dimension_numbers<[1], [0], [0], [1], [0, 0, 1, 1], [], []>} : vector<8x128xf32>, vector<128x128xf32>, vector<8x128xf32> -> vector<8x128xf32>
    %c0_28 = arith.constant 0 : index
    %c0_29 = arith.constant 0 : index
    %33 = vector.load %arg11[%c0_28, %c0_29] : memref<1x128xf32, #tpu.memory_space<vmem>>, vector<1x128xf32>
    %34 = vector.broadcast %33 : vector<1x128xf32> to vector<8x128xf32>
    %35 = arith.addf %32, %34 : vector<8x128xf32>
    %cst_30 = arith.constant 0.000000e+00 : f32
    %36 = vector.broadcast %cst_30 : f32 to vector<8x128xf32>
    %37 = arith.maximumf %35, %36 : vector<8x128xf32>
    %c0_31 = arith.constant 0 : index
    %c0_32 = arith.constant 0 : index
    %38 = vector.load %arg12[%c0_31, %c0_32] : memref<128x128xf32, #tpu.memory_space<vmem>>, vector<128x128xf32>
    %cst_33 = arith.constant dense<0.000000e+00> : vector<8x128xf32>
    %39 = tpu.matmul %37, %38, %cst_33 {dimension_numbers = #tpu.dot_dimension_numbers<[1], [0], [0], [1], [0, 0, 1, 1], [], []>} : vector<8x128xf32>, vector<128x128xf32>, vector<8x128xf32> -> vector<8x128xf32>
    %c0_34 = arith.constant 0 : index
    %c0_35 = arith.constant 0 : index
    %40 = vector.load %arg13[%c0_34, %c0_35] : memref<1x128xf32, #tpu.memory_space<vmem>>, vector<1x128xf32>
    %41 = vector.broadcast %40 : vector<1x128xf32> to vector<8x128xf32>
    %42 = arith.addf %39, %41 : vector<8x128xf32>
    %43 = arith.addf %28, %42 : vector<8x128xf32>
    %cst_36 = arith.constant 0.000000e+00 : f32
    %44 = vector.broadcast %cst_36 : f32 to vector<8x128xf32>
    %45 = arith.maximumf %43, %44 : vector<8x128xf32>
    %c0_37 = arith.constant 0 : index
    %c0_38 = arith.constant 0 : index
    %46 = vector.load %arg14[%c0_37, %c0_38] : memref<128x128xf32, #tpu.memory_space<vmem>>, vector<128x128xf32>
    %cst_39 = arith.constant dense<0.000000e+00> : vector<8x128xf32>
    %47 = tpu.matmul %45, %46, %cst_39 {dimension_numbers = #tpu.dot_dimension_numbers<[1], [0], [0], [1], [0, 0, 1, 1], [], []>} : vector<8x128xf32>, vector<128x128xf32>, vector<8x128xf32> -> vector<8x128xf32>
    %c0_40 = arith.constant 0 : index
    %c0_41 = arith.constant 0 : index
    %48 = vector.load %arg15[%c0_40, %c0_41] : memref<1x128xf32, #tpu.memory_space<vmem>>, vector<1x128xf32>
    %49 = vector.broadcast %48 : vector<1x128xf32> to vector<8x128xf32>
    %50 = arith.addf %47, %49 : vector<8x128xf32>
    %c0_42 = arith.constant 0 : index
    %c0_43 = arith.constant 0 : index
    %51 = vector.load %arg16[%c0_42, %c0_43] : memref<8x128xf32, #tpu.memory_space<vmem>>, vector<8x128xf32>
    tpu.vector_store %arg16[%c0_42, %c0_43], %50 {strides = array<i32>} : memref<8x128xf32, #tpu.memory_space<vmem>>, vector<8x128xf32>,
    return
  }
  func.func @transform_0(%arg0: i32) -> (i32, i32) {
    %c0_i32 = arith.constant 0 : i32
    %c0_i32_0 = arith.constant 0 : i32
    return %arg0, %c0_i32 : i32, i32
  }
  func.func @transform_1(%arg0: i32) -> (i32, i32) {
    %c0_i32 = arith.constant 0 : i32
    %c0_i32_0 = arith.constant 0 : i32
    return %arg0, %c0_i32 : i32, i32
  }
  func.func @transform_2(%arg0: i32) -> (i32, i32) {
    %c0_i32 = arith.constant 0 : i32
    %c0_i32_0 = arith.constant 0 : i32
    %c0_i32_1 = arith.constant 0 : i32
    return %c0_i32, %c0_i32_0 : i32, i32
  }
  func.func @transform_3(%arg0: i32) -> (i32, i32) {
    %c0_i32 = arith.constant 0 : i32
    %c0_i32_0 = arith.constant 0 : i32
    %c0_i32_1 = arith.constant 0 : i32
    return %c0_i32, %c0_i32_0 : i32, i32
  }
  func.func @transform_4(%arg0: i32) -> (i32, i32) {
    %c0_i32 = arith.constant 0 : i32
    %c0_i32_0 = arith.constant 0 : i32
    %c0_i32_1 = arith.constant 0 : i32
    return %c0_i32, %c0_i32_0 : i32, i32
  }
  func.func @transform_5(%arg0: i32) -> (i32, i32) {
    %c0_i32 = arith.constant 0 : i32
    %c0_i32_0 = arith.constant 0 : i32
    %c0_i32_1 = arith.constant 0 : i32
    return %c0_i32, %c0_i32_0 : i32, i32
  }
  func.func @transform_6(%arg0: i32) -> (i32, i32) {
    %c0_i32 = arith.constant 0 : i32
    %c0_i32_0 = arith.constant 0 : i32
    %c0_i32_1 = arith.constant 0 : i32
    return %c0_i32, %c0_i32_0 : i32, i32
  }
  func.func @transform_7(%arg0: i32) -> (i32, i32) {
    %c0_i32 = arith.constant 0 : i32
    %c0_i32_0 = arith.constant 0 : i32
    %c0_i32_1 = arith.constant 0 : i32
    return %c0_i32, %c0_i32_0 : i32, i32
  }
  func.func @transform_8(%arg0: i32) -> (i32, i32) {
    %c0_i32 = arith.constant 0 : i32
    %c0_i32_0 = arith.constant 0 : i32
    %c0_i32_1 = arith.constant 0 : i32
    return %c0_i32, %c0_i32_0 : i32, i32
  }
  func.func @transform_9(%arg0: i32) -> (i32, i32) {
    %c0_i32 = arith.constant 0 : i32
    %c0_i32_0 = arith.constant 0 : i32
    %c0_i32_1 = arith.constant 0 : i32
    return %c0_i32, %c0_i32_0 : i32, i32
  }
  func.func @transform_10(%arg0: i32) -> (i32, i32) {
    %c0_i32 = arith.constant 0 : i32
    %c0_i32_0 = arith.constant 0 : i32
    %c0_i32_1 = arith.constant 0 : i32
    return %c0_i32, %c0_i32_0 : i32, i32
  }
  func.func @transform_11(%arg0: i32) -> (i32, i32) {
    %c0_i32 = arith.constant 0 : i32
    %c0_i32_0 = arith.constant 0 : i32
    %c0_i32_1 = arith.constant 0 : i32
    return %c0_i32, %c0_i32_0 : i32, i32
  }
  func.func @transform_12(%arg0: i32) -> (i32, i32) {
    %c0_i32 = arith.constant 0 : i32
    %c0_i32_0 = arith.constant 0 : i32
    %c0_i32_1 = arith.constant 0 : i32
    return %c0_i32, %c0_i32_0 : i32, i32
  }
  func.func @transform_13(%arg0: i32) -> (i32, i32) {
    %c0_i32 = arith.constant 0 : i32
    %c0_i32_0 = arith.constant 0 : i32
    %c0_i32_1 = arith.constant 0 : i32
    return %c0_i32, %c0_i32_0 : i32, i32
  }
  func.func @transform_14(%arg0: i32) -> (i32, i32) {
    %c0_i32 = arith.constant 0 : i32
    %c0_i32_0 = arith.constant 0 : i32
    %c0_i32_1 = arith.constant 0 : i32
    return %c0_i32, %c0_i32_0 : i32, i32
  }
  func.func @transform_15(%arg0: i32) -> (i32, i32) {
    %c0_i32 = arith.constant 0 : i32
    %c0_i32_0 = arith.constant 0 : i32
    return %arg0, %c0_i32 : i32, i32
  }
}

</mosaic_0001>

<llo_original>
// kernel: angle_resnet_forward.1
$region0: #{angle_resnet_forward.1}
  #allocation0 [shape = 'u32[]', space=smem, size = 0x4, offset = 0x4, fixed_abs, tag = 'smem constant byte address 0x4 - core index']
  #allocation1 [shape = 'u32[144,128]{1,0:T(1,128)}', space=vmem, size = 0x12000, scoped, tag = 'internal scratch']
  %s0 = inlined_call_operand.hbm [shape: f32[16,32], index: 0, kind: input, shape index: {}]
  %s1 = inlined_call_operand.hbm [shape: f32[16,32], index: 1, kind: input, shape index: {}]
  %s2 = inlined_call_operand.vmem [shape: f32[32,128], index: 2, kind: input, shape index: {}]
  %s3 = inlined_call_operand.hbm [shape: f32[32,128], index: 3, kind: input, shape index: {}]
  %s4 = inlined_call_operand.vmem [shape: f32[1,128], index: 4, kind: input, shape index: {}]
  %s5 = inlined_call_operand.hbm [shape: f32[128,128], index: 5, kind: input, shape index: {}]
  %s6 = inlined_call_operand.vmem [shape: f32[1,128], index: 6, kind: input, shape index: {}]
  %s7 = inlined_call_operand.hbm [shape: f32[128,128], index: 7, kind: input, shape index: {}]
  %s8 = inlined_call_operand.vmem [shape: f32[1,128], index: 8, kind: input, shape index: {}]
  %s9 = inlined_call_operand.hbm [shape: f32[128,128], index: 9, kind: input, shape index: {}]
  %s10 = inlined_call_operand.vmem [shape: f32[1,128], index: 10, kind: input, shape index: {}]
  %s11 = inlined_call_operand.hbm [shape: f32[128,128], index: 11, kind: input, shape index: {}]
  %s12 = inlined_call_operand.vmem [shape: f32[1,128], index: 12, kind: input, shape index: {}]
  %s13 = inlined_call_operand.hbm [shape: f32[128,128], index: 13, kind: input, shape index: {}]
  %s14 = inlined_call_operand.vmem [shape: f32[1,128], index: 14, kind: input, shape index: {}]
  %s15 = inlined_call_operand.vmem [shape: f32[16,128], index: 15, kind: output, shape index: {}]
  %s16 = sld [smem:[#allocation0]]
  $region125: #{angle_resnet_forward.1} parent=0
    _
  %s18 = ssub.s32 1, %s16
  %s19 = scalar_select 0, %s18, %s16
  $region1: #{angle_resnet_forward.1} parent=0
    #allocation2 [shape = 'u8[8192]{0}', space=vmem, size = 0x2000, scoped, tag = 'input window, operand 0']
    #allocation3 [shape = 's32[2]{0}', space=sflag, size = 0x8, scoped, tag = 'scoped memory for angle_resnet_forward.1']
    #allocation4 [shape = 'u8[8192]{0}', space=vmem, size = 0x2000, scoped, tag = 'input window, operand 1']
    #allocation5 [shape = 's32[2]{0}', space=sflag, size = 0x8, scoped, tag = 'scoped memory for angle_resnet_forward.1']
    #allocation6 [shape = 'u8[16384]{0}', space=vmem, size = 0x4000, scoped, tag = 'input window, operand 3, single buffered']
    #allocation7 [shape = 'u8[65536]{0}', space=vmem, size = 0x10000, scoped, tag = 'input window, operand 5, single buffered']
    #allocation8 [shape = 's32[1]{0}', space=sflag, size = 0x4, scoped, tag = 'scoped memory for angle_resnet_forward.1']
    #allocation9 [shape = 'u8[65536]{0}', space=vmem, size = 0x10000, scoped, tag = 'input window, operand 7, single buffered']
    #allocation10 [shape = 'u8[65536]{0}', space=vmem, size = 0x10000, scoped, tag = 'input window, operand 9, single buffered']
    #allocation11 [shape = 's32[1]{0}', space=sflag, size = 0x4, scoped, tag = 'scoped memory for angle_resnet_forward.1']
    #allocation12 [shape = 'u8[65536]{0}', space=vmem, size = 0x10000, scoped, tag = 'input window, operand 11, single buffered']
    #allocation13 [shape = 'u8[65536]{0}', space=vmem, size = 0x10000, scoped, tag = 'input window, operand 13, single buffered']
    #allocation14 [shape = 's32[1]{0}', space=sflag, size = 0x4, scoped, tag = 'scoped memory for angle_resnet_forward.1']
    %20 = vsyncpa [#allocation3], 0
    %s21 = scalar_lea.sflag [#allocation3], 1
    %22 = vsyncpa %s21, 0
    %23 = vsyncpa [#allocation5], 0
    %s24 = scalar_lea.sflag [#allocation5], 1
    %25 = vsyncpa %s24, 0
    %26 = vsyncpa [#allocation8], 0
    %27 = vsyncpa [#allocation11], 0
    %28 = vsyncpa [#allocation14], 0
    loop: start=0, step=1, limit=4
    $region2: #{angle_resnet_forward.1} parent=1 // loop_pre_header
      _
    $region3: #{angle_resnet_forward.1} parent=1 // loop_header
      %s30 = sphi 0, %s34
      %p31 = scmp.ge.s32.totalorder %s30, 4
      %s40 = sphi 0, %s42
      %s43 = sphi 0, %s40
      %s44 = sphi 0, %s43
      %s60 = sphi 0, %s44
      %s66 = sphi 0, %s68
      %s69 = sphi 0, %s66
      %s70 = sphi 0, %s69
      %s86 = sphi 0, %s70
      %s90 = sphi 0, %s90
      %s92 = sphi 0, %s90
      %s93 = sphi 0, %s92
      %s107 = sphi 0, %s93
      %s111 = sphi 0, %s111
      %s113 = sphi 0, %s111
      %s114 = sphi 0, %s113
      %s128 = sphi 0, %s114
      %s132 = sphi 0, %s132
      %s134 = sphi 0, %s132
      %s135 = sphi 0, %s134
      %s149 = sphi 0, %s135
      %s153 = sphi 0, %s153
      %s155 = sphi 0, %s153
      %s156 = sphi 0, %s155
      %s170 = sphi 0, %s156
      %s174 = sphi 0, %s174
      %s176 = sphi 0, %s174
      %s177 = sphi 0, %s176
      %s191 = sphi 0, %s177
      %s195 = sphi 0, %s195
      %s197 = sphi 0, %s195
      %s198 = sphi 0, %s197
      %s212 = sphi 0, %s198
      %s216 = sphi 0, %s216
      %s218 = sphi 0, %s216
      %s219 = sphi 0, %s218
      %s233 = sphi 0, %s219
      %s237 = sphi 0, %s237
      %s239 = sphi 0, %s237
      %s240 = sphi 0, %s239
      %s254 = sphi 0, %s240
      %s258 = sphi 0, %s258
      %s260 = sphi 0, %s258
      %s261 = sphi 0, %s260
      %s275 = sphi 0, %s261
      %s279 = sphi 0, %s279
      %s281 = sphi 0, %s279
      %s282 = sphi 0, %s281
      %s296 = sphi 0, %s282
      %s300 = sphi 0, %s300
      %s302 = sphi 0, %s300
      %s303 = sphi 0, %s302
      %s317 = sphi 0, %s303
      %s321 = sphi 0, %s321
      %s323 = sphi 0, %s321
      %s324 = sphi 0, %s323
      %s338 = sphi 0, %s324
      %s342 = sphi 0, %s342
      %s344 = sphi 0, %s342
      %s345 = sphi 0, %s344
      %s359 = sphi 0, %s345
      %s365 = sphi 0, %s367
      %s368 = sphi 0, %s365
      %s369 = sphi 0, %s368
      %s385 = sphi 0, %s369
    $region4: #{angle_resnet_forward.1} parent=1 // loop_header_branch
      %33 = sbr.rel (%p31) target = $region8
    $region5: #{angle_resnet_forward.1} parent=1 // loop_body
      %s35 = ssub.s32 %s30, 1
      %s36 = ssub.s32 %s30, 2
      %s37 = sadd.s32 %s30, 1
      %s38 = ssub.s32 %s30, %s37
      %p39 = scmp.eq.s32.totalorder %s38, 0
      %s41 = sadd.s32 %s40, 1
      %s42 = scalar_select %p39, %s40, %s41
      %p45 = pneg %p39
      %p46 = scmp.eq.s32.totalorder %s30, 1
      %p47 = por %p45, %p46
      %p48 = scmp.ne.s32.totalorder %s40, %s43
      %p49 = scmp.eq.s32.totalorder %s30, 0
      %p50 = por %p48, %p49
      %p51 = scmp.ne.s32.totalorder %s40, %s43
      %p52 = scmp.eq.s32.totalorder %s35, 1
      %p53 = por %p51, %p52
      %p54 = scmp.ne.s32.totalorder %s43, %s44
      %p55 = scmp.eq.s32.totalorder %s35, 0
      %p56 = por %p54, %p55
      %p57 = scmp.ne.s32.totalorder %s43, %s44
      %p58 = scmp.eq.s32.totalorder %s36, 1
      %p59 = por %p57, %p58
      %p61 = scmp.ne.s32.totalorder %s44, %s60
      %p62 = scmp.eq.s32.totalorder %s36, 0
      %p63 = por %p61, %p62
      %s64 = ssub.s32 %s30, %s37
      %p65 = scmp.eq.s32.totalorder %s64, 0
      %s67 = sadd.s32 %s66, 1
      %s68 = scalar_select %p65, %s66, %s67
      %p71 = pneg %p65
      %p72 = scmp.eq.s32.totalorder %s30, 1
      %p73 = por %p71, %p72
      %p74 = scmp.ne.s32.totalorder %s66, %s69
      %p75 = scmp.eq.s32.totalorder %s30, 0
      %p76 = por %p74, %p75
      %p77 = scmp.ne.s32.totalorder %s66, %s69
      %p78 = scmp.eq.s32.totalorder %s35, 1
      %p79 = por %p77, %p78
      %p80 = scmp.ne.s32.totalorder %s69, %s70
      %p81 = scmp.eq.s32.totalorder %s35, 0
      %p82 = por %p80, %p81
      %p83 = scmp.ne.s32.totalorder %s69, %s70
      %p84 = scmp.eq.s32.totalorder %s36, 1
      %p85 = por %p83, %p84
      %p87 = scmp.ne.s32.totalorder %s70, %s86
      %p88 = scmp.eq.s32.totalorder %s36, 0
      %p89 = por %p87, %p88
      %s91 = sadd.s32 %s90, 1
      %p94 = scmp.eq.s32.totalorder %s30, 1
      %p95 = scmp.ne.s32.totalorder %s90, %s92
      %p96 = scmp.eq.s32.totalorder %s30, 0
      %p97 = por %p95, %p96
      %p98 = scmp.ne.s32.totalorder %s90, %s92
      %p99 = scmp.eq.s32.totalorder %s35, 1
      %p100 = por %p98, %p99
      %p101 = scmp.ne.s32.totalorder %s92, %s93
      %p102 = scmp.eq.s32.totalorder %s35, 0
      %p103 = por %p101, %p102
      %p104 = scmp.ne.s32.totalorder %s92, %s93
      %p105 = scmp.eq.s32.totalorder %s36, 1
      %p106 = por %p104, %p105
      %p108 = scmp.ne.s32.totalorder %s93, %s107
      %p109 = scmp.eq.s32.totalorder %s36, 0
      %p110 = por %p108, %p109
      %s112 = sadd.s32 %s111, 1
      %p115 = scmp.eq.s32.totalorder %s30, 1
      %p116 = scmp.ne.s32.totalorder %s111, %s113
      %p117 = scmp.eq.s32.totalorder %s30, 0
      %p118 = por %p116, %p117
      %p119 = scmp.ne.s32.totalorder %s111, %s113
      %p120 = scmp.eq.s32.totalorder %s35, 1
      %p121 = por %p119, %p120
      %p122 = scmp.ne.s32.totalorder %s113, %s114
      %p123 = scmp.eq.s32.totalorder %s35, 0
      %p124 = por %p122, %p123
      %p125 = scmp.ne.s32.totalorder %s113, %s114
      %p126 = scmp.eq.s32.totalorder %s36, 1
      %p127 = por %p125, %p126
      %p129 = scmp.ne.s32.totalorder %s114, %s128
      %p130 = scmp.eq.s32.totalorder %s36, 0
      %p131 = por %p129, %p130
      %s133 = sadd.s32 %s132, 1
      %p136 = scmp.eq.s32.totalorder %s30, 1
      %p137 = scmp.ne.s32.totalorder %s132, %s134
      %p138 = scmp.eq.s32.totalorder %s30, 0
      %p139 = por %p137, %p138
      %p140 = scmp.ne.s32.totalorder %s132, %s134
      %p141 = scmp.eq.s32.totalorder %s35, 1
      %p142 = por %p140, %p141
      %p143 = scmp.ne.s32.totalorder %s134, %s135
      %p144 = scmp.eq.s32.totalorder %s35, 0
      %p145 = por %p143, %p144
      %p146 = scmp.ne.s32.totalorder %s134, %s135
      %p147 = scmp.eq.s32.totalorder %s36, 1
      %p148 = por %p146, %p147
      %p150 = scmp.ne.s32.totalorder %s135, %s149
      %p151 = scmp.eq.s32.totalorder %s36, 0
      %p152 = por %p150, %p151
      %s154 = sadd.s32 %s153, 1
      %p157 = scmp.eq.s32.totalorder %s30, 1
      %p158 = scmp.ne.s32.totalorder %s153, %s155
      %p159 = scmp.eq.s32.totalorder %s30, 0
      %p160 = por %p158, %p159
      %p161 = scmp.ne.s32.totalorder %s153, %s155
      %p162 = scmp.eq.s32.totalorder %s35, 1
      %p163 = por %p161, %p162
      %p164 = scmp.ne.s32.totalorder %s155, %s156
      %p165 = scmp.eq.s32.totalorder %s35, 0
      %p166 = por %p164, %p165
      %p167 = scmp.ne.s32.totalorder %s155, %s156
      %p168 = scmp.eq.s32.totalorder %s36, 1
      %p169 = por %p167, %p168
      %p171 = scmp.ne.s32.totalorder %s156, %s170
      %p172 = scmp.eq.s32.totalorder %s36, 0
      %p173 = por %p171, %p172
      %s175 = sadd.s32 %s174, 1
      %p178 = scmp.eq.s32.totalorder %s30, 1
      %p179 = scmp.ne.s32.totalorder %s174, %s176
      %p180 = scmp.eq.s32.totalorder %s30, 0
      %p181 = por %p179, %p180
      %p182 = scmp.ne.s32.totalorder %s174, %s176
      %p183 = scmp.eq.s32.totalorder %s35, 1
      %p184 = por %p182, %p183
      %p185 = scmp.ne.s32.totalorder %s176, %s177
      %p186 = scmp.eq.s32.totalorder %s35, 0
      %p187 = por %p185, %p186
      %p188 = scmp.ne.s32.totalorder %s176, %s177
      %p189 = scmp.eq.s32.totalorder %s36, 1
      %p190 = por %p188, %p189
      %p192 = scmp.ne.s32.totalorder %s177, %s191
      %p193 = scmp.eq.s32.totalorder %s36, 0
      %p194 = por %p192, %p193
      %s196 = sadd.s32 %s195, 1
      %p199 = scmp.eq.s32.totalorder %s30, 1
      %p200 = scmp.ne.s32.totalorder %s195, %s197
      %p201 = scmp.eq.s32.totalorder %s30, 0
      %p202 = por %p200, %p201
      %p203 = scmp.ne.s32.totalorder %s195, %s197
      %p204 = scmp.eq.s32.totalorder %s35, 1
      %p205 = por %p203, %p204
      %p206 = scmp.ne.s32.totalorder %s197, %s198
      %p207 = scmp.eq.s32.totalorder %s35, 0
      %p208 = por %p206, %p207
      %p209 = scmp.ne.s32.totalorder %s197, %s198
      %p210 = scmp.eq.s32.totalorder %s36, 1
      %p211 = por %p209, %p210
      %p213 = scmp.ne.s32.totalorder %s198, %s212
      %p214 = scmp.eq.s32.totalorder %s36, 0
      %p215 = por %p213, %p214
      %s217 = sadd.s32 %s216, 1
      %p220 = scmp.eq.s32.totalorder %s30, 1
      %p221 = scmp.ne.s32.totalorder %s216, %s218
      %p222 = scmp.eq.s32.totalorder %s30, 0
      %p223 = por %p221, %p222
      %p224 = scmp.ne.s32.totalorder %s216, %s218
      %p225 = scmp.eq.s32.totalorder %s35, 1
      %p226 = por %p224, %p225
      %p227 = scmp.ne.s32.totalorder %s218, %s219
      %p228 = scmp.eq.s32.totalorder %s35, 0
      %p229 = por %p227, %p228
      %p230 = scmp.ne.s32.totalorder %s218, %s219
      %p231 = scmp.eq.s32.totalorder %s36, 1
      %p232 = por %p230, %p231
      %p234 = scmp.ne.s32.totalorder %s219, %s233
      %p235 = scmp.eq.s32.totalorder %s36, 0
      %p236 = por %p234, %p235
      %s238 = sadd.s32 %s237, 1
      %p241 = scmp.eq.s32.totalorder %s30, 1
      %p242 = scmp.ne.s32.totalorder %s237, %s239
      %p243 = scmp.eq.s32.totalorder %s30, 0
      %p244 = por %p242, %p243
      %p245 = scmp.ne.s32.totalorder %s237, %s239
      %p246 = scmp.eq.s32.totalorder %s35, 1
      %p247 = por %p245, %p246
      %p248 = scmp.ne.s32.totalorder %s239, %s240
      %p249 = scmp.eq.s32.totalorder %s35, 0
      %p250 = por %p248, %p249
      %p251 = scmp.ne.s32.totalorder %s239, %s240
      %p252 = scmp.eq.s32.totalorder %s36, 1
      %p253 = por %p251, %p252
      %p255 = scmp.ne.s32.totalorder %s240, %s254
      %p256 = scmp.eq.s32.totalorder %s36, 0
      %p257 = por %p255, %p256
      %s259 = sadd.s32 %s258, 1
      %p262 = scmp.eq.s32.totalorder %s30, 1
      %p263 = scmp.ne.s32.totalorder %s258, %s260
      %p264 = scmp.eq.s32.totalorder %s30, 0
      %p265 = por %p263, %p264
      %p266 = scmp.ne.s32.totalorder %s258, %s260
      %p267 = scmp.eq.s32.totalorder %s35, 1
      %p268 = por %p266, %p267
      %p269 = scmp.ne.s32.totalorder %s260, %s261
      %p270 = scmp.eq.s32.totalorder %s35, 0
      %p271 = por %p269, %p270
      %p272 = scmp.ne.s32.totalorder %s260, %s261
      %p273 = scmp.eq.s32.totalorder %s36, 1
      %p274 = por %p272, %p273
      %p276 = scmp.ne.s32.totalorder %s261, %s275
      %p277 = scmp.eq.s32.totalorder %s36, 0
      %p278 = por %p276, %p277
      %s280 = sadd.s32 %s279, 1
      %p283 = scmp.eq.s32.totalorder %s30, 1
      %p284 = scmp.ne.s32.totalorder %s279, %s281
      %p285 = scmp.eq.s32.totalorder %s30, 0
      %p286 = por %p284, %p285
      %p287 = scmp.ne.s32.totalorder %s279, %s281
      %p288 = scmp.eq.s32.totalorder %s35, 1
      %p289 = por %p287, %p288
      %p290 = scmp.ne.s32.totalorder %s281, %s282
      %p291 = scmp.eq.s32.totalorder %s35, 0
      %p292 = por %p290, %p291
      %p293 = scmp.ne.s32.totalorder %s281, %s282
      %p294 = scmp.eq.s32.totalorder %s36, 1
      %p295 = por %p293, %p294
      %p297 = scmp.ne.s32.totalorder %s282, %s296
      %p298 = scmp.eq.s32.totalorder %s36, 0
      %p299 = por %p297, %p298
      %s301 = sadd.s32 %s300, 1
      %p304 = scmp.eq.s32.totalorder %s30, 1
      %p305 = scmp.ne.s32.totalorder %s300, %s302
      %p306 = scmp.eq.s32.totalorder %s30, 0
      %p307 = por %p305, %p306
      %p308 = scmp.ne.s32.totalorder %s300, %s302
      %p309 = scmp.eq.s32.totalorder %s35, 1
      %p310 = por %p308, %p309
      %p311 = scmp.ne.s32.totalorder %s302, %s303
      %p312 = scmp.eq.s32.totalorder %s35, 0
      %p313 = por %p311, %p312
      %p314 = scmp.ne.s32.totalorder %s302, %s303
      %p315 = scmp.eq.s32.totalorder %s36, 1
      %p316 = por %p314, %p315
      %p318 = scmp.ne.s32.totalorder %s303, %s317
      %p319 = scmp.eq.s32.totalorder %s36, 0
      %p320 = por %p318, %p319
      %s322 = sadd.s32 %s321, 1
      %p325 = scmp.eq.s32.totalorder %s30, 1
      %p326 = scmp.ne.s32.totalorder %s321, %s323
      %p327 = scmp.eq.s32.totalorder %s30, 0
      %p328 = por %p326, %p327
      %p329 = scmp.ne.s32.totalorder %s321, %s323
      %p330 = scmp.eq.s32.totalorder %s35, 1
      %p331 = por %p329, %p330
      %p332 = scmp.ne.s32.totalorder %s323, %s324
      %p333 = scmp.eq.s32.totalorder %s35, 0
      %p334 = por %p332, %p333
      %p335 = scmp.ne.s32.totalorder %s323, %s324
      %p336 = scmp.eq.s32.totalorder %s36, 1
      %p337 = por %p335, %p336
      %p339 = scmp.ne.s32.totalorder %s324, %s338
      %p340 = scmp.eq.s32.totalorder %s36, 0
      %p341 = por %p339, %p340
      %s343 = sadd.s32 %s342, 1
      %p346 = scmp.eq.s32.totalorder %s30, 1
      %p347 = scmp.ne.s32.totalorder %s342, %s344
      %p348 = scmp.eq.s32.totalorder %s30, 0
      %p349 = por %p347, %p348
      %p350 = scmp.ne.s32.totalorder %s342, %s344
      %p351 = scmp.eq.s32.totalorder %s35, 1
      %p352 = por %p350, %p351
      %p353 = scmp.ne.s32.totalorder %s344, %s345
      %p354 = scmp.eq.s32.totalorder %s35, 0
      %p355 = por %p353, %p354
      %p356 = scmp.ne.s32.totalorder %s344, %s345
      %p357 = scmp.eq.s32.totalorder %s36, 1
      %p358 = por %p356, %p357
      %p360 = scmp.ne.s32.totalorder %s345, %s359
      %p361 = scmp.eq.s32.totalorder %s36, 0
      %p362 = por %p360, %p361
      %s363 = ssub.s32 %s30, %s37
      %p364 = scmp.eq.s32.totalorder %s363, 0
      %s366 = sadd.s32 %s365, 1
      %s367 = scalar_select %p364, %s365, %s366
      %p370 = pneg %p364
      %p371 = scmp.eq.s32.totalorder %s30, 1
      %p372 = por %p370, %p371
      %p373 = scmp.ne.s32.totalorder %s365, %s368
      %p374 = scmp.eq.s32.totalorder %s30, 0
      %p375 = por %p373, %p374
      %p376 = scmp.ne.s32.totalorder %s365, %s368
      %p377 = scmp.eq.s32.totalorder %s35, 1
      %p378 = por %p376, %p377
      %p379 = scmp.ne.s32.totalorder %s368, %s369
      %p380 = scmp.eq.s32.totalorder %s35, 0
      %p381 = por %p379, %p380
      %p382 = scmp.ne.s32.totalorder %s368, %s369
      %p383 = scmp.eq.s32.totalorder %s36, 1
      %p384 = por %p382, %p383
      %p386 = scmp.ne.s32.totalorder %s369, %s385
      %p387 = scmp.eq.s32.totalorder %s36, 0
      %p388 = por %p386, %p387
      %p389 = scmp.le.s32.totalorder 1, %s30
      %p390 = scmp.lt.s32.totalorder %s30, 3
      %p391 = pnand %p389, %p390
      %p392 = pneg %p391
      // Predicated region
      $region9: #{angle_resnet_forward.1} parent=5 // pred_check
        _
      $region10: #{angle_resnet_forward.1} parent=5 // pred_check_branch
        %394 = sbr.rel (%p391) target = $region12
      $region11: #{angle_resnet_forward.1} parent=5 // pred_region
        %s395 = ssub.s32 %s30, 1
        // Predicated region
        $region13: #{angle_resnet_forward.1} parent=11 // pred_check
          %p396 = pneg %p103
        $region14: #{angle_resnet_forward.1} parent=11 // pred_check_branch
          %398 = sbr.rel (%p396) target = $region16
        $region15: #{angle_resnet_forward.1} parent=11 // pred_region
          _
        $region16: #{angle_resnet_forward.1} parent=11 // pred_fallthru
          _
        // Predicated region
        $region17: #{angle_resnet_forward.1} parent=11 // pred_check
          %p399 = pneg %p124
        $region18: #{angle_resnet_forward.1} parent=11 // pred_check_branch
          %401 = sbr.rel (%p399) target = $region20
        $region19: #{angle_resnet_forward.1} parent=11 // pred_region
          %s403 = ssub.s32 512, 512
          %404 = vsyncadd [#allocation5], %s403
          %s405 = sshll.u32 [#allocation6], 4
          %s406 = int_to_ptr.vmem [resolvable:$true] %s405
          %411 = dma.hbm_to_vmem [thread:$0]  %s3, 512, %s406, [#allocation5], 128, 128, 8
        $region20: #{angle_resnet_forward.1} parent=11 // pred_fallthru
          _
        // Predicated region
        $region21: #{angle_resnet_forward.1} parent=11 // pred_check
          %p412 = pneg %p145
        $region22: #{angle_resnet_forward.1} parent=11 // pred_check_branch
          %414 = sbr.rel (%p412) target = $region24
        $region23: #{angle_resnet_forward.1} parent=11 // pred_region
          _
        $region24: #{angle_resnet_forward.1} parent=11 // pred_fallthru
          _
        // Predicated region
        $region25: #{angle_resnet_forward.1} parent=11 // pred_check
          %p415 = pneg %p166
        $region26: #{angle_resnet_forward.1} parent=11 // pred_check_branch
          %417 = sbr.rel (%p415) target = $region28
        $region27: #{angle_resnet_forward.1} parent=11 // pred_region
          %s419 = ssub.s32 2048, 2048
          %420 = vsyncadd [#allocation8], %s419
          %s421 = sshll.u32 [#allocation7], 4
          %s422 = int_to_ptr.vmem [resolvable:$true] %s421
          %427 = dma.hbm_to_vmem [thread:$0]  %s5, 2048, %s422, [#allocation8], 128, 128, 8
        $region28: #{angle_resnet_forward.1} parent=11 // pred_fallthru
          _
        // Predicated region
        $region29: #{angle_resnet_forward.1} parent=11 // pred_check
          %p428 = pneg %p187
        $region30: #{angle_resnet_forward.1} parent=11 // pred_check_branch
          %430 = sbr.rel (%p428) target = $region32
        $region31: #{angle_resnet_forward.1} parent=11 // pred_region
          _
        $region32: #{angle_resnet_forward.1} parent=11 // pred_fallthru
          _
        // Predicated region
        $region33: #{angle_resnet_forward.1} parent=11 // pred_check
          %p431 = pneg %p208
        $region34: #{angle_resnet_forward.1} parent=11 // pred_check_branch
          %433 = sbr.rel (%p431) target = $region36
        $region35: #{angle_resnet_forward.1} parent=11 // pred_region
          %s435 = ssub.s32 2048, 2048
          %436 = vsyncadd [#allocation8], %s435
          %s437 = sshll.u32 [#allocation9], 4
          %s438 = int_to_ptr.vmem [resolvable:$true] %s437
          %443 = dma.hbm_to_vmem [thread:$0]  %s7, 2048, %s438, [#allocation8], 128, 128, 8
        $region36: #{angle_resnet_forward.1} parent=11 // pred_fallthru
          _
        // Predicated region
        $region37: #{angle_resnet_forward.1} parent=11 // pred_check
          %p444 = pneg %p229
        $region38: #{angle_resnet_forward.1} parent=11 // pred_check_branch
          %446 = sbr.rel (%p444) target = $region40
        $region39: #{angle_resnet_forward.1} parent=11 // pred_region
          _
        $region40: #{angle_resnet_forward.1} parent=11 // pred_fallthru
          _
        // Predicated region
        $region41: #{angle_resnet_forward.1} parent=11 // pred_check
          %p447 = pneg %p250
        $region42: #{angle_resnet_forward.1} parent=11 // pred_check_branch
          %449 = sbr.rel (%p447) target = $region44
        $region43: #{angle_resnet_forward.1} parent=11 // pred_region
          %s451 = ssub.s32 2048, 2048
          %452 = vsyncadd [#allocation11], %s451
          %s453 = sshll.u32 [#allocation10], 4
          %s454 = int_to_ptr.vmem [resolvable:$true] %s453
          %459 = dma.hbm_to_vmem [thread:$0]  %s9, 2048, %s454, [#allocation11], 128, 128, 8
        $region44: #{angle_resnet_forward.1} parent=11 // pred_fallthru
          _
        // Predicated region
        $region45: #{angle_resnet_forward.1} parent=11 // pred_check
          %p460 = pneg %p271
        $region46: #{angle_resnet_forward.1} parent=11 // pred_check_branch
          %462 = sbr.rel (%p460) target = $region48
        $region47: #{angle_resnet_forward.1} parent=11 // pred_region
          _
        $region48: #{angle_resnet_forward.1} parent=11 // pred_fallthru
          _
        // Predicated region
        $region49: #{angle_resnet_forward.1} parent=11 // pred_check
          %p463 = pneg %p292
        $region50: #{angle_resnet_forward.1} parent=11 // pred_check_branch
          %465 = sbr.rel (%p463) target = $region52
        $region51: #{angle_resnet_forward.1} parent=11 // pred_region
          %s467 = ssub.s32 2048, 2048
          %468 = vsyncadd [#allocation11], %s467
          %s469 = sshll.u32 [#allocation12], 4
          %s470 = int_to_ptr.vmem [resolvable:$true] %s469
          %475 = dma.hbm_to_vmem [thread:$0]  %s11, 2048, %s470, [#allocation11], 128, 128, 8
        $region52: #{angle_resnet_forward.1} parent=11 // pred_fallthru
          _
        // Predicated region
        $region53: #{angle_resnet_forward.1} parent=11 // pred_check
          %p476 = pneg %p313
        $region54: #{angle_resnet_forward.1} parent=11 // pred_check_branch
          %478 = sbr.rel (%p476) target = $region56
        $region55: #{angle_resnet_forward.1} parent=11 // pred_region
          _
        $region56: #{angle_resnet_forward.1} parent=11 // pred_fallthru
          _
        // Predicated region
        $region57: #{angle_resnet_forward.1} parent=11 // pred_check
          %p479 = pneg %p334
        $region58: #{angle_resnet_forward.1} parent=11 // pred_check_branch
          %481 = sbr.rel (%p479) target = $region60
        $region59: #{angle_resnet_forward.1} parent=11 // pred_region
          %s483 = ssub.s32 2048, 2048
          %484 = vsyncadd [#allocation14], %s483
          %s485 = sshll.u32 [#allocation13], 4
          %s486 = int_to_ptr.vmem [resolvable:$true] %s485
          %491 = dma.hbm_to_vmem [thread:$0]  %s13, 2048, %s486, [#allocation14], 128, 128, 8
        $region60: #{angle_resnet_forward.1} parent=11 // pred_fallthru
          _
        // Predicated region
        $region61: #{angle_resnet_forward.1} parent=11 // pred_check
          %p492 = pneg %p355
        $region62: #{angle_resnet_forward.1} parent=11 // pred_check_branch
          %494 = sbr.rel (%p492) target = $region64
        $region63: #{angle_resnet_forward.1} parent=11 // pred_region
          _
        $region64: #{angle_resnet_forward.1} parent=11 // pred_fallthru
          _
      $region12: #{angle_resnet_forward.1} parent=5 // pred_fallthru
        _
      %p495 = scmp.lt.s32.totalorder %s30, 2
      // Predicated region
      $region65: #{angle_resnet_forward.1} parent=5 // pred_check
        %p496 = pneg %p495
      $region66: #{angle_resnet_forward.1} parent=5 // pred_check_branch
        %498 = sbr.rel (%p496) target = $region68
      $region67: #{angle_resnet_forward.1} parent=5 // pred_region
        // Predicated region
        $region69: #{angle_resnet_forward.1} parent=67 // pred_check
          %p499 = pneg %p50
        $region70: #{angle_resnet_forward.1} parent=67 // pred_check_branch
          %501 = sbr.rel (%p499) target = $region72
        $region71: #{angle_resnet_forward.1} parent=67 // pred_region
          %s502 = sand.u32 %s40, 1
          %s503 = scalar_lea.sflag [#allocation3], %s502
          %s504 = sand.u32 %s40, 1
          %s505 = smul.addr %s504, 8
          %s506 = scalar_lea.vmem [#allocation2], %s505
          %s508 = ssub.s32 128, 128
          %509 = vsyncadd %s503, %s508
          %s510 = smul.addr %s30, 128
          %s511 = scalar_lea.hbm %s0, %s510
          %s513 = sshll.u32 %s506, 4
          %s514 = int_to_ptr.vmem [resolvable:$true] %s513
          %516 = dma.hbm_to_vmem [thread:$0]  %s511, 128, %s514, %s503
        $region72: #{angle_resnet_forward.1} parent=67 // pred_fallthru
          _
        // Predicated region
        $region73: #{angle_resnet_forward.1} parent=67 // pred_check
          %p517 = pneg %p76
        $region74: #{angle_resnet_forward.1} parent=67 // pred_check_branch
          %519 = sbr.rel (%p517) target = $region76
        $region75: #{angle_resnet_forward.1} parent=67 // pred_region
          %s520 = sand.u32 %s30, 1
          %s521 = scalar_lea.sflag [#allocation5], %s520
          %s522 = sand.u32 %s66, 1
          %s523 = smul.addr %s522, 8
          %s524 = scalar_lea.vmem [#allocation4], %s523
          %s526 = ssub.s32 128, 128
          %527 = vsyncadd %s521, %s526
          %s528 = smul.addr %s30, 128
          %s529 = scalar_lea.hbm %s1, %s528
          %s531 = sshll.u32 %s524, 4
          %s532 = int_to_ptr.vmem [resolvable:$true] %s531
          %534 = dma.hbm_to_vmem [thread:$0]  %s529, 128, %s532, %s521
        $region76: #{angle_resnet_forward.1} parent=67 // pred_fallthru
          _
      $region68: #{angle_resnet_forward.1} parent=5 // pred_fallthru
        _
      %p535 = scmp.le.s32.totalorder 1, %s30
      %p536 = scmp.lt.s32.totalorder %s30, 3
      %p537 = pnand %p535, %p536
      %p538 = pneg %p537
      // Predicated region
      $region77: #{angle_resnet_forward.1} parent=5 // pred_check
        _
      $region78: #{angle_resnet_forward.1} parent=5 // pred_check_branch
        %540 = sbr.rel (%p537) target = $region80
      $region79: #{angle_resnet_forward.1} parent=5 // pred_region
        %s541 = ssub.s32 %s30, 1
        %s542 = sand.u32 %s43, 1
        %s543 = scalar_lea.sflag [#allocation3], %s542
        %s544 = sand.u32 %s43, 1
        %s545 = smul.addr %s544, 8
        %s546 = scalar_lea.vmem [#allocation2], %s545
        // Predicated region
        $region81: #{angle_resnet_forward.1} parent=79 // pred_check
          %p547 = pneg %p56
        $region82: #{angle_resnet_forward.1} parent=79 // pred_check_branch
          %549 = sbr.rel (%p547) target = $region84
        $region83: #{angle_resnet_forward.1} parent=79 // pred_region
          %550 = dma.done %s543, 128
        $region84: #{angle_resnet_forward.1} parent=79 // pred_fallthru
          _
        %s551 = sand.u32 %s35, 1
        %s552 = scalar_lea.sflag [#allocation5], %s551
        %s553 = sand.u32 %s69, 1
        %s554 = smul.addr %s553, 8
        %s555 = scalar_lea.vmem [#allocation4], %s554
        // Predicated region
        $region85: #{angle_resnet_forward.1} parent=79 // pred_check
          %p556 = pneg %p82
        $region86: #{angle_resnet_forward.1} parent=79 // pred_check_branch
          %558 = sbr.rel (%p556) target = $region88
        $region87: #{angle_resnet_forward.1} parent=79 // pred_region
          %559 = dma.done %s552, 128
        $region88: #{angle_resnet_forward.1} parent=79 // pred_fallthru
          _
        // Predicated region
        $region89: #{angle_resnet_forward.1} parent=79 // pred_check
          %p560 = pneg %p124
        $region90: #{angle_resnet_forward.1} parent=79 // pred_check_branch
          %562 = sbr.rel (%p560) target = $region92
        $region91: #{angle_resnet_forward.1} parent=79 // pred_region
          %563 = dma.done [#allocation5], 512
        $region92: #{angle_resnet_forward.1} parent=79 // pred_fallthru
          _
        // Predicated region
        $region93: #{angle_resnet_forward.1} parent=79 // pred_check
          %p564 = pneg %p166
        $region94: #{angle_resnet_forward.1} parent=79 // pred_check_branch
          %566 = sbr.rel (%p564) target = $region96
        $region95: #{angle_resnet_forward.1} parent=79 // pred_region
          %567 = dma.done [#allocation8], 2048
        $region96: #{angle_resnet_forward.1} parent=79 // pred_fallthru
          _
        // Predicated region
        $region97: #{angle_resnet_forward.1} parent=79 // pred_check
          %p568 = pneg %p208
        $region98: #{angle_resnet_forward.1} parent=79 // pred_check_branch
          %570 = sbr.rel (%p568) target = $region100
        $region99: #{angle_resnet_forward.1} parent=79 // pred_region
          %571 = dma.done [#allocation8], 2048
        $region100: #{angle_resnet_forward.1} parent=79 // pred_fallthru
          _
        // Predicated region
        $region101: #{angle_resnet_forward.1} parent=79 // pred_check
          %p572 = pneg %p250
        $region102: #{angle_resnet_forward.1} parent=79 // pred_check_branch
          %574 = sbr.rel (%p572) target = $region104
        $region103: #{angle_resnet_forward.1} parent=79 // pred_region
          %575 = dma.done [#allocation11], 2048
        $region104: #{angle_resnet_forward.1} parent=79 // pred_fallthru
          _
        // Predicated region
        $region105: #{angle_resnet_forward.1} parent=79 // pred_check
          %p576 = pneg %p292
        $region106: #{angle_resnet_forward.1} parent=79 // pred_check_branch
          %578 = sbr.rel (%p576) target = $region108
        $region107: #{angle_resnet_forward.1} parent=79 // pred_region
          %579 = dma.done [#allocation11], 2048
        $region108: #{angle_resnet_forward.1} parent=79 // pred_fallthru
          _
        // Predicated region
        $region109: #{angle_resnet_forward.1} parent=79 // pred_check
          %p580 = pneg %p334
        $region110: #{angle_resnet_forward.1} parent=79 // pred_check_branch
          %582 = sbr.rel (%p580) target = $region112
        $region111: #{angle_resnet_forward.1} parent=79 // pred_region
          %583 = dma.done [#allocation14], 2048
        $region112: #{angle_resnet_forward.1} parent=79 // pred_fallthru
          _
        %s584 = sand.u32 %s43, 1
        %s585 = scalar_lea.sflag [#allocation3], %s584
        %s586 = sand.u32 %s43, 1
        %s587 = smul.addr %s586, 8
        %s588 = scalar_lea.vmem [#allocation2], %s587
        %p589 = pneg %p56
        %p590 = pneg %p53
        %s591 = sand.u32 %s35, 1
        %s592 = scalar_lea.sflag [#allocation5], %s591
        %s593 = sand.u32 %s69, 1
        %s594 = smul.addr %s593, 8
        %s595 = scalar_lea.vmem [#allocation4], %s594
        %p596 = pneg %p82
        %p597 = pneg %p79
        %p598 = pneg %p103
        %p599 = pneg %p100
        %p600 = pneg %p124
        %p601 = pneg %p121
        %p602 = pneg %p145
        %p603 = pneg %p142
        %p604 = pneg %p166
        %p605 = pneg %p163
        %p606 = pneg %p187
        %p607 = pneg %p184
        %p608 = pneg %p208
        %p609 = pneg %p205
        %p610 = pneg %p229
        %p611 = pneg %p226
        %p612 = pneg %p250
        %p613 = pneg %p247
        %p614 = pneg %p271
        %p615 = pneg %p268
        %p616 = pneg %p292
        %p617 = pneg %p289
        %p618 = pneg %p313
        %p619 = pneg %p310
        %p620 = pneg %p334
        %p621 = pneg %p331
        %p622 = pneg %p355
        %p623 = pneg %p352
        %p624 = pneg %p381
        %p625 = pneg %p378
        %p626 = scmp.lt.s32.totalorder %s35, 1
        %s627 = scalar_select %p626, %s35, 1
        %s628 = smul.addr %s627, 8
        %s629 = scalar_lea.vmem %s15, %s628
        %p630 = scmp.lt.s32.totalorder %s35, 1
        %s631 = scalar_select %p630, %s35, 1
        %s632 = smul.addr %s631, 8
        %s633 = scalar_lea.vmem %s15, %s632
        %v634 = vld [vmem:[%s546] sm:$0xff]
        %v635 = vmax.f32 %v634, 0.0
        %v636 = vld [vmem:[%s2] sm:$0xff]
        %v637 = vld [vmem:[%s2 + $0x8] sm:$0xff]
        %v638 = vld [vmem:[%s2 + $0x10] sm:$0xff]
        %v639 = vld [vmem:[%s2 + $0x18] sm:$0xff]
        %v640 = vld [vmem:[%s555] sm:$0xff]
        %v641 = vmax.f32 %v640, 0.0
        %v642 = vld [vmem:[#allocation6] sm:$0xff]
        %v643 = vld [vmem:[#allocation6 + $0x8] sm:$0xff]
        %v644 = vld [vmem:[#allocation6 + $0x10] sm:$0xff]
        %v645 = vld [vmem:[#allocation6 + $0x18] sm:$0xff]
        %vm646 = vcmask 261120
        %v648 = vsel %vm646, %v641, 0
        %650 = vmatprep.subr.mxu0 0.0
        %651 = vmatpush1.msra.mxu0 %v642
        %652 = vmatprep.subr.mxu0 0.0
        %653 = vmatpush1.msra.mxu0 %v643
        %654 = vmatprep.subr.mxu0 0.0
        %655 = vmatpush1.msra.mxu0 %v644
        %656 = vmatprep.subr.mxu0 0.0
        %657 = vmatpush1.msra.mxu0 %v645
        %658 = vmatprep.subr.mxu0 0.0
        %659 = vmatpush1.msra.mxu0 0.0
        %660 = vmatprep.subr.mxu0 0.0
        %661 = vmatpush1.msra.mxu0 0.0
        %662 = vmatprep.subr.mxu0 0.0
        %663 = vmatpush1.msra.mxu0 0.0
        %664 = vmatprep.subr.mxu0 0.0
        %665 = vmatpush1.msra.mxu0 0.0
        %666 = vmatprep.subr.mxu0 0.0
        %667 = vmatpush1.msra.mxu0 0.0
        %668 = vmatprep.subr.mxu0 0.0
        %669 = vmatpush1.msra.mxu0 0.0
        %670 = vmatprep.subr.mxu0 0.0
        %671 = vmatpush1.msra.mxu0 0.0
        %672 = vmatprep.subr.mxu0 0.0
        %673 = vmatpush1.msra.mxu0 0.0
        %674 = vmatprep.subr.mxu0 0.0
        %675 = vmatpush1.msra.mxu0 0.0
        %676 = vmatprep.subr.mxu0 0.0
        %677 = vmatpush1.msra.mxu0 0.0
        %678 = vmatprep.subr.mxu0 0.0
        %679 = vmatpush1.msra.mxu0 0.0
        %680 = vmatprep.subr.mxu0 0.0
        %681 = vmatpush1.msra.mxu0 0.0
        %682 = vmatprep.subr.mxu0 0.0
        %683 = vmatpush1.msra.mxu0 0.0
        %684 = vmatprep.subr.mxu0 0.0
        %685 = vmatpush1.msra.mxu0 0.0
        %686 = vmatprep.subr.mxu0 0.0
        %687 = vmatpush1.msra.mxu0 0.0
        %688 = vmatprep.subr.mxu0 0.0
        %689 = vmatpush1.msra.mxu0 0.0
        %690 = vmatprep.subr.mxu0 0.0
        %691 = vmatpush1.msra.mxu0 0.0
        %692 = vmatprep.subr.mxu0 0.0
        %693 = vmatpush1.msra.mxu0 0.0
        %694 = vmatprep.subr.mxu0 0.0
        %695 = vmatpush1.msra.mxu0 0.0
        %696 = vmatprep.subr.mxu0 0.0
        %697 = vmatpush1.msra.mxu0 0.0
        %698 = vmatprep.subr.mxu0 0.0
        %699 = vmatpush1.msra.mxu0 0.0
        %700 = vmatprep.subr.mxu0 0.0
        %701 = vmatpush1.msra.mxu0 0.0
        %702 = vmatprep.subr.mxu0 0.0
        %703 = vmatpush1.msra.mxu0 0.0
        %704 = vmatprep.subr.mxu0 0.0
        %705 = vmatpush1.msra.mxu0 0.0
        %706 = vmatprep.subr.mxu0 0.0
        %707 = vmatpush1.msra.mxu0 0.0
        %708 = vmatprep.subr.mxu0 0.0
        %709 = vmatpush1.msra.mxu0 0.0
        %710 = vmatprep.subr.mxu0 0.0
        %711 = vmatpush1.msra.mxu0 0.0
        %712 = vmatprep.subr.mxu0 0.0
        %713 = vmatpush1.msra.mxu0 0.0
        %714 = vmatprep.mubr.f32.mxu0 0.0
        %715 = vmatmul.mubr.f32.gmra.mrb[0].mxu0 %v648
        %v716 = vpop.f32.mrb[0].mxu0
        %v717 = vadd.f32 0.0, %v716
        %v718 = vpop.f32.mrb[0].mxu0
        %719 = vdwg.mxu0
        %v721 = vsel %vm646, %v635, 0
        %723 = vmatprep.subr.mxu0 0.0
        %724 = vmatpush1.msra.mxu0 %v636
        %725 = vmatprep.subr.mxu0 0.0
        %726 = vmatpush1.msra.mxu0 %v637
        %727 = vmatprep.subr.mxu0 0.0
        %728 = vmatpush1.msra.mxu0 %v638
        %729 = vmatprep.subr.mxu0 0.0
        %730 = vmatpush1.msra.mxu0 %v639
        %731 = vmatprep.subr.mxu0 0.0
        %732 = vmatpush1.msra.mxu0 0.0
        %733 = vmatprep.subr.mxu0 0.0
        %734 = vmatpush1.msra.mxu0 0.0
        %735 = vmatprep.subr.mxu0 0.0
        %736 = vmatpush1.msra.mxu0 0.0
        %737 = vmatprep.subr.mxu0 0.0
        %738 = vmatpush1.msra.mxu0 0.0
        %739 = vmatprep.subr.mxu0 0.0
        %740 = vmatpush1.msra.mxu0 0.0
        %741 = vmatprep.subr.mxu0 0.0
        %742 = vmatpush1.msra.mxu0 0.0
        %743 = vmatprep.subr.mxu0 0.0
        %744 = vmatpush1.msra.mxu0 0.0
        %745 = vmatprep.subr.mxu0 0.0
        %746 = vmatpush1.msra.mxu0 0.0
        %747 = vmatprep.subr.mxu0 0.0
        %748 = vmatpush1.msra.mxu0 0.0
        %749 = vmatprep.subr.mxu0 0.0
        %750 = vmatpush1.msra.mxu0 0.0
        %751 = vmatprep.subr.mxu0 0.0
        %752 = vmatpush1.msra.mxu0 0.0
        %753 = vmatprep.subr.mxu0 0.0
        %754 = vmatpush1.msra.mxu0 0.0
        %755 = vmatprep.subr.mxu0 0.0
        %756 = vmatpush1.msra.mxu0 0.0
        %757 = vmatprep.subr.mxu0 0.0
        %758 = vmatpush1.msra.mxu0 0.0
        %759 = vmatprep.subr.mxu0 0.0
        %760 = vmatpush1.msra.mxu0 0.0
        %761 = vmatprep.subr.mxu0 0.0
        %762 = vmatpush1.msra.mxu0 0.0
        %763 = vmatprep.subr.mxu0 0.0
        %764 = vmatpush1.msra.mxu0 0.0
        %765 = vmatprep.subr.mxu0 0.0
        %766 = vmatpush1.msra.mxu0 0.0
        %767 = vmatprep.subr.mxu0 0.0
        %768 = vmatpush1.msra.mxu0 0.0
        %769 = vmatprep.subr.mxu0 0.0
        %770 = vmatpush1.msra.mxu0 0.0
        %771 = vmatprep.subr.mxu0 0.0
        %772 = vmatpush1.msra.mxu0 0.0
        %773 = vmatprep.subr.mxu0 0.0
        %774 = vmatpush1.msra.mxu0 0.0
        %775 = vmatprep.subr.mxu0 0.0
        %776 = vmatpush1.msra.mxu0 0.0
        %777 = vmatprep.subr.mxu0 0.0
        %778 = vmatpush1.msra.mxu0 0.0
        %779 = vmatprep.subr.mxu0 0.0
        %780 = vmatpush1.msra.mxu0 0.0
        %781 = vmatprep.subr.mxu0 0.0
        %782 = vmatpush1.msra.mxu0 0.0
        %783 = vmatprep.subr.mxu0 0.0
        %784 = vmatpush1.msra.mxu0 0.0
        %785 = vmatprep.subr.mxu0 0.0
        %786 = vmatpush1.msra.mxu0 0.0
        %787 = vmatprep.mubr.f32.mxu0 0.0
        %788 = vmatmul.mubr.f32.gmra.mrb[0].mxu0 %v721
        %v789 = vpop.f32.mrb[0].mxu0
        %v790 = vadd.f32 %v717, %v789
        %v791 = vpop.f32.mrb[0].mxu0
        %792 = vdwg.mxu0
        %v793 = vld [vmem:[%s4] sm:$0x1]
        %v795 = vlaneseq
        %v796 = vshrl.u32 %v795, 7
        %v797 = vsub.s32 0, %v796
        %v798 = vrot.slane %v793, %v797
        %v800 = vadd.f32 %v790, %v798
        %v801 = vmax.f32 %v800, 0.0
        %v802 = vld [vmem:[#allocation7] sm:$0xff]
        %v803 = vld [vmem:[#allocation7 + $0x8] sm:$0xff]
        %v804 = vld [vmem:[#allocation7 + $0x10] sm:$0xff]
        %v805 = vld [vmem:[#allocation7 + $0x18] sm:$0xff]
        %v806 = vld [vmem:[#allocation7 + $0x20] sm:$0xff]
        %v807 = vld [vmem:[#allocation7 + $0x28] sm:$0xff]
        %v808 = vld [vmem:[#allocation7 + $0x30] sm:$0xff]
        %v809 = vld [vmem:[#allocation7 + $0x38] sm:$0xff]
        %v810 = vld [vmem:[#allocation7 + $0x40] sm:$0xff]
        %v811 = vld [vmem:[#allocation7 + $0x48] sm:$0xff]
        %v812 = vld [vmem:[#allocation7 + $0x50] sm:$0xff]
        %v813 = vld [vmem:[#allocation7 + $0x58] sm:$0xff]
        %v814 = vld [vmem:[#allocation7 + $0x60] sm:$0xff]
        %v815 = vld [vmem:[#allocation7 + $0x68] sm:$0xff]
        %v816 = vld [vmem:[#allocation7 + $0x70] sm:$0xff]
        %v817 = vld [vmem:[#allocation7 + $0x78] sm:$0xff]
        %v818 = vld [vmem:[%s6] sm:$0x1]
        %v820 = vlaneseq
        %v821 = vshrl.u32 %v820, 7
        %v822 = vsub.s32 0, %v821
        %v823 = vrot.slane %v818, %v822
        %825 = vmatprep.subr.mxu0 0.0
        %826 = vmatpush1.msra.mxu0 %v802
        %827 = vmatprep.subr.mxu0 0.0
        %828 = vmatpush1.msra.mxu0 %v803
        %829 = vmatprep.subr.mxu0 0.0
        %830 = vmatpush1.msra.mxu0 %v804
        %831 = vmatprep.subr.mxu0 0.0
        %832 = vmatpush1.msra.mxu0 %v805
        %833 = vmatprep.subr.mxu0 0.0
        %834 = vmatpush1.msra.mxu0 %v806
        %835 = vmatprep.subr.mxu0 0.0
        %836 = vmatpush1.msra.mxu0 %v807
        %837 = vmatprep.subr.mxu0 0.0
        %838 = vmatpush1.msra.mxu0 %v808
        %839 = vmatprep.subr.mxu0 0.0
        %840 = vmatpush1.msra.mxu0 %v809
        %841 = vmatprep.subr.mxu0 0.0
        %842 = vmatpush1.msra.mxu0 %v810
        %843 = vmatprep.subr.mxu0 0.0
        %844 = vmatpush1.msra.mxu0 %v811
        %845 = vmatprep.subr.mxu0 0.0
        %846 = vmatpush1.msra.mxu0 %v812
        %847 = vmatprep.subr.mxu0 0.0
        %848 = vmatpush1.msra.mxu0 %v813
        %849 = vmatprep.subr.mxu0 0.0
        %850 = vmatpush1.msra.mxu0 %v814
        %851 = vmatprep.subr.mxu0 0.0
        %852 = vmatpush1.msra.mxu0 %v815
        %853 = vmatprep.subr.mxu0 0.0
        %854 = vmatpush1.msra.mxu0 %v816
        %855 = vmatprep.subr.mxu0 0.0
        %856 = vmatpush1.msra.mxu0 %v817
        %857 = vmatprep.subr.mxu0 0.0
        %858 = vmatpush1.msra.mxu0 0.0
        %859 = vmatprep.subr.mxu0 0.0
        %860 = vmatpush1.msra.mxu0 0.0
        %861 = vmatprep.subr.mxu0 0.0
        %862 = vmatpush1.msra.mxu0 0.0
        %863 = vmatprep.subr.mxu0 0.0
        %864 = vmatpush1.msra.mxu0 0.0
        %865 = vmatprep.subr.mxu0 0.0
        %866 = vmatpush1.msra.mxu0 0.0
        %867 = vmatprep.subr.mxu0 0.0
        %868 = vmatpush1.msra.mxu0 0.0
        %869 = vmatprep.subr.mxu0 0.0
        %870 = vmatpush1.msra.mxu0 0.0
        %871 = vmatprep.subr.mxu0 0.0
        %872 = vmatpush1.msra.mxu0 0.0
        %873 = vmatprep.subr.mxu0 0.0
        %874 = vmatpush1.msra.mxu0 0.0
        %875 = vmatprep.subr.mxu0 0.0
        %876 = vmatpush1.msra.mxu0 0.0
        %877 = vmatprep.subr.mxu0 0.0
        %878 = vmatpush1.msra.mxu0 0.0
        %879 = vmatprep.subr.mxu0 0.0
        %880 = vmatpush1.msra.mxu0 0.0
        %881 = vmatprep.subr.mxu0 0.0
        %882 = vmatpush1.msra.mxu0 0.0
        %883 = vmatprep.subr.mxu0 0.0
        %884 = vmatpush1.msra.mxu0 0.0
        %885 = vmatprep.subr.mxu0 0.0
        %886 = vmatpush1.msra.mxu0 0.0
        %887 = vmatprep.subr.mxu0 0.0
        %888 = vmatpush1.msra.mxu0 0.0
        %889 = vmatprep.mubr.f32.mxu0 0.0
        %890 = vmatmul.mubr.f32.gmra.mrb[0].mxu0 %v801
        %v891 = vpop.f32.mrb[0].mxu0
        %v892 = vadd.f32 %v823, %v891
        %v893 = vpop.f32.mrb[0].mxu0
        %894 = vdwg.mxu0
        %v895 = vmax.f32 %v892, 0.0
        %v896 = vld [vmem:[#allocation9] sm:$0xff]
        %v897 = vld [vmem:[#allocation9 + $0x8] sm:$0xff]
        %v898 = vld [vmem:[#allocation9 + $0x10] sm:$0xff]
        %v899 = vld [vmem:[#allocation9 + $0x18] sm:$0xff]
        %v900 = vld [vmem:[#allocation9 + $0x20] sm:$0xff]
        %v901 = vld [vmem:[#allocation9 + $0x28] sm:$0xff]
        %v902 = vld [vmem:[#allocation9 + $0x30] sm:$0xff]
        %v903 = vld [vmem:[#allocation9 + $0x38] sm:$0xff]
        %v904 = vld [vmem:[#allocation9 + $0x40] sm:$0xff]
        %v905 = vld [vmem:[#allocation9 + $0x48] sm:$0xff]
        %v906 = vld [vmem:[#allocation9 + $0x50] sm:$0xff]
        %v907 = vld [vmem:[#allocation9 + $0x58] sm:$0xff]
        %v908 = vld [vmem:[#allocation9 + $0x60] sm:$0xff]
        %v909 = vld [vmem:[#allocation9 + $0x68] sm:$0xff]
        %v910 = vld [vmem:[#allocation9 + $0x70] sm:$0xff]
        %v911 = vld [vmem:[#allocation9 + $0x78] sm:$0xff]
        %v912 = vld [vmem:[%s8] sm:$0x1]
        %v914 = vlaneseq
        %v915 = vshrl.u32 %v914, 7
        %v916 = vsub.s32 0, %v915
        %v917 = vrot.slane %v912, %v916
        %919 = vmatprep.subr.mxu0 0.0
        %920 = vmatpush1.msra.mxu0 %v896
        %921 = vmatprep.subr.mxu0 0.0
        %922 = vmatpush1.msra.mxu0 %v897
        %923 = vmatprep.subr.mxu0 0.0
        %924 = vmatpush1.msra.mxu0 %v898
        %925 = vmatprep.subr.mxu0 0.0
        %926 = vmatpush1.msra.mxu0 %v899
        %927 = vmatprep.subr.mxu0 0.0
        %928 = vmatpush1.msra.mxu0 %v900
        %929 = vmatprep.subr.mxu0 0.0
        %930 = vmatpush1.msra.mxu0 %v901
        %931 = vmatprep.subr.mxu0 0.0
        %932 = vmatpush1.msra.mxu0 %v902
        %933 = vmatprep.subr.mxu0 0.0
        %934 = vmatpush1.msra.mxu0 %v903
        %935 = vmatprep.subr.mxu0 0.0
        %936 = vmatpush1.msra.mxu0 %v904
        %937 = vmatprep.subr.mxu0 0.0
        %938 = vmatpush1.msra.mxu0 %v905
        %939 = vmatprep.subr.mxu0 0.0
        %940 = vmatpush1.msra.mxu0 %v906
        %941 = vmatprep.subr.mxu0 0.0
        %942 = vmatpush1.msra.mxu0 %v907
        %943 = vmatprep.subr.mxu0 0.0
        %944 = vmatpush1.msra.mxu0 %v908
        %945 = vmatprep.subr.mxu0 0.0
        %946 = vmatpush1.msra.mxu0 %v909
        %947 = vmatprep.subr.mxu0 0.0
        %948 = vmatpush1.msra.mxu0 %v910
        %949 = vmatprep.subr.mxu0 0.0
        %950 = vmatpush1.msra.mxu0 %v911
        %951 = vmatprep.subr.mxu0 0.0
        %952 = vmatpush1.msra.mxu0 0.0
        %953 = vmatprep.subr.mxu0 0.0
        %954 = vmatpush1.msra.mxu0 0.0
        %955 = vmatprep.subr.mxu0 0.0
        %956 = vmatpush1.msra.mxu0 0.0
        %957 = vmatprep.subr.mxu0 0.0
        %958 = vmatpush1.msra.mxu0 0.0
        %959 = vmatprep.subr.mxu0 0.0
        %960 = vmatpush1.msra.mxu0 0.0
        %961 = vmatprep.subr.mxu0 0.0
        %962 = vmatpush1.msra.mxu0 0.0
        %963 = vmatprep.subr.mxu0 0.0
        %964 = vmatpush1.msra.mxu0 0.0
        %965 = vmatprep.subr.mxu0 0.0
        %966 = vmatpush1.msra.mxu0 0.0
        %967 = vmatprep.subr.mxu0 0.0
        %968 = vmatpush1.msra.mxu0 0.0
        %969 = vmatprep.subr.mxu0 0.0
        %970 = vmatpush1.msra.mxu0 0.0
        %971 = vmatprep.subr.mxu0 0.0
        %972 = vmatpush1.msra.mxu0 0.0
        %973 = vmatprep.subr.mxu0 0.0
        %974 = vmatpush1.msra.mxu0 0.0
        %975 = vmatprep.subr.mxu0 0.0
        %976 = vmatpush1.msra.mxu0 0.0
        %977 = vmatprep.subr.mxu0 0.0
        %978 = vmatpush1.msra.mxu0 0.0
        %979 = vmatprep.subr.mxu0 0.0
        %980 = vmatpush1.msra.mxu0 0.0
        %981 = vmatprep.subr.mxu0 0.0
        %982 = vmatpush1.msra.mxu0 0.0
        %983 = vmatprep.mubr.f32.mxu0 0.0
        %984 = vmatmul.mubr.f32.gmra.mrb[0].mxu0 %v895
        %v985 = vpop.f32.mrb[0].mxu0
        %v986 = vadd.f32 %v917, %v985
        %v987 = vpop.f32.mrb[0].mxu0
        %988 = vdwg.mxu0
        %v989 = vadd.f32 %v800, %v986
        %v990 = vmax.f32 %v989, 0.0
        %v991 = vld [vmem:[#allocation10] sm:$0xff]
        %v992 = vld [vmem:[#allocation10 + $0x8] sm:$0xff]
        %v993 = vld [vmem:[#allocation10 + $0x10] sm:$0xff]
        %v994 = vld [vmem:[#allocation10 + $0x18] sm:$0xff]
        %v995 = vld [vmem:[#allocation10 + $0x20] sm:$0xff]
        %v996 = vld [vmem:[#allocation10 + $0x28] sm:$0xff]
        %v997 = vld [vmem:[#allocation10 + $0x30] sm:$0xff]
        %v998 = vld [vmem:[#allocation10 + $0x38] sm:$0xff]
        %v999 = vld [vmem:[#allocation10 + $0x40] sm:$0xff]
        %v1000 = vld [vmem:[#allocation10 + $0x48] sm:$0xff]
        %v1001 = vld [vmem:[#allocation10 + $0x50] sm:$0xff]
        %v1002 = vld [vmem:[#allocation10 + $0x58] sm:$0xff]
        %v1003 = vld [vmem:[#allocation10 + $0x60] sm:$0xff]
        %v1004 = vld [vmem:[#allocation10 + $0x68] sm:$0xff]
        %v1005 = vld [vmem:[#allocation10 + $0x70] sm:$0xff]
        %v1006 = vld [vmem:[#allocation10 + $0x78] sm:$0xff]
        %v1007 = vld [vmem:[%s10] sm:$0x1]
        %v1009 = vlaneseq
        %v1010 = vshrl.u32 %v1009, 7
        %v1011 = vsub.s32 0, %v1010
        %v1012 = vrot.slane %v1007, %v1011
        %1014 = vmatprep.subr.mxu0 0.0
        %1015 = vmatpush1.msra.mxu0 %v991
        %1016 = vmatprep.subr.mxu0 0.0
        %1017 = vmatpush1.msra.mxu0 %v992
        %1018 = vmatprep.subr.mxu0 0.0
        %1019 = vmatpush1.msra.mxu0 %v993
        %1020 = vmatprep.subr.mxu0 0.0
        %1021 = vmatpush1.msra.mxu0 %v994
        %1022 = vmatprep.subr.mxu0 0.0
        %1023 = vmatpush1.msra.mxu0 %v995
        %1024 = vmatprep.subr.mxu0 0.0
        %1025 = vmatpush1.msra.mxu0 %v996
        %1026 = vmatprep.subr.mxu0 0.0
        %1027 = vmatpush1.msra.mxu0 %v997
        %1028 = vmatprep.subr.mxu0 0.0
        %1029 = vmatpush1.msra.mxu0 %v998
        %1030 = vmatprep.subr.mxu0 0.0
        %1031 = vmatpush1.msra.mxu0 %v999
        %1032 = vmatprep.subr.mxu0 0.0
        %1033 = vmatpush1.msra.mxu0 %v1000
        %1034 = vmatprep.subr.mxu0 0.0
        %1035 = vmatpush1.msra.mxu0 %v1001
        %1036 = vmatprep.subr.mxu0 0.0
        %1037 = vmatpush1.msra.mxu0 %v1002
        %1038 = vmatprep.subr.mxu0 0.0
        %1039 = vmatpush1.msra.mxu0 %v1003
        %1040 = vmatprep.subr.mxu0 0.0
        %1041 = vmatpush1.msra.mxu0 %v1004
        %1042 = vmatprep.subr.mxu0 0.0
        %1043 = vmatpush1.msra.mxu0 %v1005
        %1044 = vmatprep.subr.mxu0 0.0
        %1045 = vmatpush1.msra.mxu0 %v1006
        %1046 = vmatprep.subr.mxu0 0.0
        %1047 = vmatpush1.msra.mxu0 0.0
        %1048 = vmatprep.subr.mxu0 0.0
        %1049 = vmatpush1.msra.mxu0 0.0
        %1050 = vmatprep.subr.mxu0 0.0
        %1051 = vmatpush1.msra.mxu0 0.0
        %1052 = vmatprep.subr.mxu0 0.0
        %1053 = vmatpush1.msra.mxu0 0.0
        %1054 = vmatprep.subr.mxu0 0.0
        %1055 = vmatpush1.msra.mxu0 0.0
        %1056 = vmatprep.subr.mxu0 0.0
        %1057 = vmatpush1.msra.mxu0 0.0
        %1058 = vmatprep.subr.mxu0 0.0
        %1059 = vmatpush1.msra.mxu0 0.0
        %1060 = vmatprep.subr.mxu0 0.0
        %1061 = vmatpush1.msra.mxu0 0.0
        %1062 = vmatprep.subr.mxu0 0.0
        %1063 = vmatpush1.msra.mxu0 0.0
        %1064 = vmatprep.subr.mxu0 0.0
        %1065 = vmatpush1.msra.mxu0 0.0
        %1066 = vmatprep.subr.mxu0 0.0
        %1067 = vmatpush1.msra.mxu0 0.0
        %1068 = vmatprep.subr.mxu0 0.0
        %1069 = vmatpush1.msra.mxu0 0.0
        %1070 = vmatprep.subr.mxu0 0.0
        %1071 = vmatpush1.msra.mxu0 0.0
        %1072 = vmatprep.subr.mxu0 0.0
        %1073 = vmatpush1.msra.mxu0 0.0
        %1074 = vmatprep.subr.mxu0 0.0
        %1075 = vmatpush1.msra.mxu0 0.0
        %1076 = vmatprep.subr.mxu0 0.0
        %1077 = vmatpush1.msra.mxu0 0.0
        %1078 = vmatprep.mubr.f32.mxu0 0.0
        %1079 = vmatmul.mubr.f32.gmra.mrb[0].mxu0 %v990
        %v1080 = vpop.f32.mrb[0].mxu0
        %v1081 = vadd.f32 %v1012, %v1080
        %v1082 = vpop.f32.mrb[0].mxu0
        %1083 = vdwg.mxu0
        %v1084 = vmax.f32 %v1081, 0.0
        %v1085 = vld [vmem:[#allocation12] sm:$0xff]
        %v1086 = vld [vmem:[#allocation12 + $0x8] sm:$0xff]
        %v1087 = vld [vmem:[#allocation12 + $0x10] sm:$0xff]
        %v1088 = vld [vmem:[#allocation12 + $0x18] sm:$0xff]
        %v1089 = vld [vmem:[#allocation12 + $0x20] sm:$0xff]
        %v1090 = vld [vmem:[#allocation12 + $0x28] sm:$0xff]
        %v1091 = vld [vmem:[#allocation12 + $0x30] sm:$0xff]
        %v1092 = vld [vmem:[#allocation12 + $0x38] sm:$0xff]
        %v1093 = vld [vmem:[#allocation12 + $0x40] sm:$0xff]
        %v1094 = vld [vmem:[#allocation12 + $0x48] sm:$0xff]
        %v1095 = vld [vmem:[#allocation12 + $0x50] sm:$0xff]
        %v1096 = vld [vmem:[#allocation12 + $0x58] sm:$0xff]
        %v1097 = vld [vmem:[#allocation12 + $0x60] sm:$0xff]
        %v1098 = vld [vmem:[#allocation12 + $0x68] sm:$0xff]
        %v1099 = vld [vmem:[#allocation12 + $0x70] sm:$0xff]
        %v1100 = vld [vmem:[#allocation12 + $0x78] sm:$0xff]
        %v1101 = vld [vmem:[%s12] sm:$0x1]
        %v1103 = vlaneseq
        %v1104 = vshrl.u32 %v1103, 7
        %v1105 = vsub.s32 0, %v1104
        %v1106 = vrot.slane %v1101, %v1105
        %1108 = vmatprep.subr.mxu0 0.0
        %1109 = vmatpush1.msra.mxu0 %v1085
        %1110 = vmatprep.subr.mxu0 0.0
        %1111 = vmatpush1.msra.mxu0 %v1086
        %1112 = vmatprep.subr.mxu0 0.0
        %1113 = vmatpush1.msra.mxu0 %v1087
        %1114 = vmatprep.subr.mxu0 0.0
        %1115 = vmatpush1.msra.mxu0 %v1088
        %1116 = vmatprep.subr.mxu0 0.0
        %1117 = vmatpush1.msra.mxu0 %v1089
        %1118 = vmatprep.subr.mxu0 0.0
        %1119 = vmatpush1.msra.mxu0 %v1090
        %1120 = vmatprep.subr.mxu0 0.0
        %1121 = vmatpush1.msra.mxu0 %v1091
        %1122 = vmatprep.subr.mxu0 0.0
        %1123 = vmatpush1.msra.mxu0 %v1092
        %1124 = vmatprep.subr.mxu0 0.0
        %1125 = vmatpush1.msra.mxu0 %v1093
        %1126 = vmatprep.subr.mxu0 0.0
        %1127 = vmatpush1.msra.mxu0 %v1094
        %1128 = vmatprep.subr.mxu0 0.0
        %1129 = vmatpush1.msra.mxu0 %v1095
        %1130 = vmatprep.subr.mxu0 0.0
        %1131 = vmatpush1.msra.mxu0 %v1096
        %1132 = vmatprep.subr.mxu0 0.0
        %1133 = vmatpush1.msra.mxu0 %v1097
        %1134 = vmatprep.subr.mxu0 0.0
        %1135 = vmatpush1.msra.mxu0 %v1098
        %1136 = vmatprep.subr.mxu0 0.0
        %1137 = vmatpush1.msra.mxu0 %v1099
        %1138 = vmatprep.subr.mxu0 0.0
        %1139 = vmatpush1.msra.mxu0 %v1100
        %1140 = vmatprep.subr.mxu0 0.0
        %1141 = vmatpush1.msra.mxu0 0.0
        %1142 = vmatprep.subr.mxu0 0.0
        %1143 = vmatpush1.msra.mxu0 0.0
        %1144 = vmatprep.subr.mxu0 0.0
        %1145 = vmatpush1.msra.mxu0 0.0
        %1146 = vmatprep.subr.mxu0 0.0
        %1147 = vmatpush1.msra.mxu0 0.0
        %1148 = vmatprep.subr.mxu0 0.0
        %1149 = vmatpush1.msra.mxu0 0.0
        %1150 = vmatprep.subr.mxu0 0.0
        %1151 = vmatpush1.msra.mxu0 0.0
        %1152 = vmatprep.subr.mxu0 0.0
        %1153 = vmatpush1.msra.mxu0 0.0
        %1154 = vmatprep.subr.mxu0 0.0
        %1155 = vmatpush1.msra.mxu0 0.0
        %1156 = vmatprep.subr.mxu0 0.0
        %1157 = vmatpush1.msra.mxu0 0.0
        %1158 = vmatprep.subr.mxu0 0.0
        %1159 = vmatpush1.msra.mxu0 0.0
        %1160 = vmatprep.subr.mxu0 0.0
        %1161 = vmatpush1.msra.mxu0 0.0
        %1162 = vmatprep.subr.mxu0 0.0
        %1163 = vmatpush1.msra.mxu0 0.0
        %1164 = vmatprep.subr.mxu0 0.0
        %1165 = vmatpush1.msra.mxu0 0.0
        %1166 = vmatprep.subr.mxu0 0.0
        %1167 = vmatpush1.msra.mxu0 0.0
        %1168 = vmatprep.subr.mxu0 0.0
        %1169 = vmatpush1.msra.mxu0 0.0
        %1170 = vmatprep.subr.mxu0 0.0
        %1171 = vmatpush1.msra.mxu0 0.0
        %1172 = vmatprep.mubr.f32.mxu0 0.0
        %1173 = vmatmul.mubr.f32.gmra.mrb[0].mxu0 %v1084
        %v1174 = vpop.f32.mrb[0].mxu0
        %v1175 = vadd.f32 %v1106, %v1174
        %v1176 = vpop.f32.mrb[0].mxu0
        %1177 = vdwg.mxu0
        %v1178 = vadd.f32 %v989, %v1175
        %v1179 = vmax.f32 %v1178, 0.0
        %v1180 = vld [vmem:[#allocation13] sm:$0xff]
        %v1181 = vld [vmem:[#allocation13 + $0x8] sm:$0xff]
        %v1182 = vld [vmem:[#allocation13 + $0x10] sm:$0xff]
        %v1183 = vld [vmem:[#allocation13 + $0x18] sm:$0xff]
        %v1184 = vld [vmem:[#allocation13 + $0x20] sm:$0xff]
        %v1185 = vld [vmem:[#allocation13 + $0x28] sm:$0xff]
        %v1186 = vld [vmem:[#allocation13 + $0x30] sm:$0xff]
        %v1187 = vld [vmem:[#allocation13 + $0x38] sm:$0xff]
        %v1188 = vld [vmem:[#allocation13 + $0x40] sm:$0xff]
        %v1189 = vld [vmem:[#allocation13 + $0x48] sm:$0xff]
        %v1190 = vld [vmem:[#allocation13 + $0x50] sm:$0xff]
        %v1191 = vld [vmem:[#allocation13 + $0x58] sm:$0xff]
        %v1192 = vld [vmem:[#allocation13 + $0x60] sm:$0xff]
        %v1193 = vld [vmem:[#allocation13 + $0x68] sm:$0xff]
        %v1194 = vld [vmem:[#allocation13 + $0x70] sm:$0xff]
        %v1195 = vld [vmem:[#allocation13 + $0x78] sm:$0xff]
        %v1196 = vld [vmem:[%s14] sm:$0x1]
        %v1198 = vlaneseq
        %v1199 = vshrl.u32 %v1198, 7
        %v1200 = vsub.s32 0, %v1199
        %v1201 = vrot.slane %v1196, %v1200
        %1203 = vmatprep.subr.mxu0 0.0
        %1204 = vmatpush1.msra.mxu0 %v1180
        %1205 = vmatprep.subr.mxu0 0.0
        %1206 = vmatpush1.msra.mxu0 %v1181
        %1207 = vmatprep.subr.mxu0 0.0
        %1208 = vmatpush1.msra.mxu0 %v1182
        %1209 = vmatprep.subr.mxu0 0.0
        %1210 = vmatpush1.msra.mxu0 %v1183
        %1211 = vmatprep.subr.mxu0 0.0
        %1212 = vmatpush1.msra.mxu0 %v1184
        %1213 = vmatprep.subr.mxu0 0.0
        %1214 = vmatpush1.msra.mxu0 %v1185
        %1215 = vmatprep.subr.mxu0 0.0
        %1216 = vmatpush1.msra.mxu0 %v1186
        %1217 = vmatprep.subr.mxu0 0.0
        %1218 = vmatpush1.msra.mxu0 %v1187
        %1219 = vmatprep.subr.mxu0 0.0
        %1220 = vmatpush1.msra.mxu0 %v1188
        %1221 = vmatprep.subr.mxu0 0.0
        %1222 = vmatpush1.msra.mxu0 %v1189
        %1223 = vmatprep.subr.mxu0 0.0
        %1224 = vmatpush1.msra.mxu0 %v1190
        %1225 = vmatprep.subr.mxu0 0.0
        %1226 = vmatpush1.msra.mxu0 %v1191
        %1227 = vmatprep.subr.mxu0 0.0
        %1228 = vmatpush1.msra.mxu0 %v1192
        %1229 = vmatprep.subr.mxu0 0.0
        %1230 = vmatpush1.msra.mxu0 %v1193
        %1231 = vmatprep.subr.mxu0 0.0
        %1232 = vmatpush1.msra.mxu0 %v1194
        %1233 = vmatprep.subr.mxu0 0.0
        %1234 = vmatpush1.msra.mxu0 %v1195
        %1235 = vmatprep.subr.mxu0 0.0
        %1236 = vmatpush1.msra.mxu0 0.0
        %1237 = vmatprep.subr.mxu0 0.0
        %1238 = vmatpush1.msra.mxu0 0.0
        %1239 = vmatprep.subr.mxu0 0.0
        %1240 = vmatpush1.msra.mxu0 0.0
        %1241 = vmatprep.subr.mxu0 0.0
        %1242 = vmatpush1.msra.mxu0 0.0
        %1243 = vmatprep.subr.mxu0 0.0
        %1244 = vmatpush1.msra.mxu0 0.0
        %1245 = vmatprep.subr.mxu0 0.0
        %1246 = vmatpush1.msra.mxu0 0.0
        %1247 = vmatprep.subr.mxu0 0.0
        %1248 = vmatpush1.msra.mxu0 0.0
        %1249 = vmatprep.subr.mxu0 0.0
        %1250 = vmatpush1.msra.mxu0 0.0
        %1251 = vmatprep.subr.mxu0 0.0
        %1252 = vmatpush1.msra.mxu0 0.0
        %1253 = vmatprep.subr.mxu0 0.0
        %1254 = vmatpush1.msra.mxu0 0.0
        %1255 = vmatprep.subr.mxu0 0.0
        %1256 = vmatpush1.msra.mxu0 0.0
        %1257 = vmatprep.subr.mxu0 0.0
        %1258 = vmatpush1.msra.mxu0 0.0
        %1259 = vmatprep.subr.mxu0 0.0
        %1260 = vmatpush1.msra.mxu0 0.0
        %1261 = vmatprep.subr.mxu0 0.0
        %1262 = vmatpush1.msra.mxu0 0.0
        %1263 = vmatprep.subr.mxu0 0.0
        %1264 = vmatpush1.msra.mxu0 0.0
        %1265 = vmatprep.subr.mxu0 0.0
        %1266 = vmatpush1.msra.mxu0 0.0
        %1267 = vmatprep.mubr.f32.mxu0 0.0
        %1268 = vmatmul.mubr.f32.gmra.mrb[0].mxu0 %v1179
        %v1269 = vpop.f32.mrb[0].mxu0
        %v1270 = vadd.f32 %v1201, %v1269
        %v1271 = vpop.f32.mrb[0].mxu0
        %1272 = vdwg.mxu0
        %1273 = vst [vmem:[%s633] sm:$0xff] %v1270
        %p1274 = scmp.lt.s32.totalorder %s35, 1
        %s1275 = scalar_select %p1274, %s35, 1
        %s1276 = smul.addr %s1275, 8
        %s1277 = scalar_lea.vmem %s15, %s1276
        // Predicated region
        $region113: #{angle_resnet_forward.1} parent=79 // pred_check
          %p1278 = pneg %p378
        $region114: #{angle_resnet_forward.1} parent=79 // pred_check_branch
          %1280 = sbr.rel (%p1278) target = $region116
        $region115: #{angle_resnet_forward.1} parent=79 // pred_region
          _
        $region116: #{angle_resnet_forward.1} parent=79 // pred_fallthru
          _
      $region80: #{angle_resnet_forward.1} parent=5 // pred_fallthru
        _
      %p1281 = scmp.le.s32.totalorder 2, %s30
      // Predicated region
      $region117: #{angle_resnet_forward.1} parent=5 // pred_check
        %p1282 = pneg %p1281
      $region118: #{angle_resnet_forward.1} parent=5 // pred_check_branch
        %1284 = sbr.rel (%p1282) target = $region120
      $region119: #{angle_resnet_forward.1} parent=5 // pred_region
        %s1285 = ssub.s32 %s30, 2
        // Predicated region
        $region121: #{angle_resnet_forward.1} parent=119 // pred_check
          %p1286 = pneg %p384
        $region122: #{angle_resnet_forward.1} parent=119 // pred_check_branch
          %1288 = sbr.rel (%p1286) target = $region124
        $region123: #{angle_resnet_forward.1} parent=119 // pred_region
          %p1289 = scmp.lt.s32.totalorder %s36, 1
          %s1290 = scalar_select %p1289, %s36, 1
          %s1291 = smul.addr %s1290, 8
          %s1292 = scalar_lea.vmem %s15, %s1291
        $region124: #{angle_resnet_forward.1} parent=119 // pred_fallthru
          _
      $region120: #{angle_resnet_forward.1} parent=5 // pred_fallthru
        _
    $region6: #{angle_resnet_forward.1} parent=1 // loop_footer
      %s34 = sadd.s32 1, %s30
    $region7: #{angle_resnet_forward.1} parent=1 // loop_footer_branch
      %29 = sbr.rel target = $region3
    $region8: #{angle_resnet_forward.1} parent=1 // loop_exit
      _
    %1293 = vsyncpa [#allocation3], 1
    %s1294 = scalar_lea.sflag [#allocation3], 1
    %1295 = vsyncpa %s1294, 1
    %1296 = vsyncpa [#allocation5], 1
    %s1297 = scalar_lea.sflag [#allocation5], 1
    %1298 = vsyncpa %s1297, 1
    %1299 = vsyncpa [#allocation8], 1
    %1300 = vsyncpa [#allocation11], 1
    %1301 = vsyncpa [#allocation14], 1

</llo_original>
